<compile_context>
chip_gen: v7x
topology: tpu7x:2x2x1
jax: 0.10.0
libtpu: 0.0.40
codegen_flags: <defaults>
</compile_context>

<pallas_src>
import math
import numpy as np
import jax
import jax.numpy as jnp
from jax.experimental import pallas as pl
from jax.experimental.pallas import tpu as pltpu


def _round_up(x, m):
    return (x + m - 1) // m * m


# ---------------------------------------------------------------- interp setup
def _bilinear_matrix_ac(in_size, out_size):
    """1-D interpolation matrix for bilinear resize with align_corners=True."""
    M = np.zeros((out_size, in_size), np.float32)
    if in_size == 1 or out_size == 1:
        M[:, 0] = 1.0
        return M
    for o in range(out_size):
        src = o * (in_size - 1) / (out_size - 1)
        i0 = min(int(math.floor(src)), in_size - 1)
        i1 = min(i0 + 1, in_size - 1)
        w1 = src - i0
        M[o, i0] += 1.0 - w1
        M[o, i1] += w1
    return M


# --------------------------------------------------------------------- kernel
def _make_kernel(num_classes, H, W, sH, sW):
    nc = num_classes

    def kernel(x_ref, w_ref, b_ref, mwT_ref, mhb_ref,
               om_ref, od_ref, ob_ref, g_sc, lo_sc):
        # ---- stage 1: all three 1x1-conv heads in ONE MXU matmul ------------
        # x_ref block: (1, C, H*W) f32; pixels (H*W) on lanes -> lane-dense.
        x = x_ref[0].astype(jnp.bfloat16)                        # (C, HW) bf16
        heads = jnp.dot(w_ref[...], x,
                        preferred_element_type=jnp.float32)      # (rows_pad, HW) f32
        heads = heads + b_ref[...]                               # f32 bias (lane bcast)

        # ---- cascaded sigmoid gating at low resolution ----------------------
        g_sc[...] = heads
        m_lo = g_sc[0:nc, :]
        d_lo = g_sc[nc:2 * nc, :] * jax.nn.sigmoid(m_lo)
        b_lo = g_sc[2 * nc:3 * nc, :] * jax.nn.sigmoid(d_lo)
        g_sc[nc:2 * nc, :] = d_lo
        g_sc[2 * nc:3 * nc, :] = b_lo

        # ---- unflatten (group, h*W + w) -> (group*H + h, w) -----------------
        # static windowed ref copies (no in-kernel reshape/relayout needed)
        for grp in range(3 * nc):
            for h in range(H):
                r = grp * H + h
                lo_sc[r:r + 1, :] = g_sc[grp:grp + 1, h * W:(h + 1) * W]

        # ---- separable bilinear upsample (align_corners=True), f32 ----------
        u1 = jnp.dot(lo_sc[...], mwT_ref[...],
                     preferred_element_type=jnp.float32)         # (3nc*H, sW)
        hi = jnp.dot(mhb_ref[...], u1,
                     preferred_element_type=jnp.float32)         # (3nc*sH, sW)

        # ---- cascaded epilogue + direct NCHW stores --------------------------
        for c in range(nc):
            b_up = hi[(2 * nc + c) * sH:(2 * nc + c + 1) * sH, :]
            d_up = hi[(nc + c) * sH:(nc + c + 1) * sH, :] + jax.nn.sigmoid(b_up)
            m_up = hi[c * sH:(c + 1) * sH, :] + jax.nn.sigmoid(d_up)
            om_ref[0, c, :, :] = m_up.astype(om_ref.dtype)
            od_ref[0, c, :, :] = d_up.astype(od_ref.dtype)
            ob_ref[0, c, :, :] = b_up.astype(ob_ref.dtype)

    return kernel


# -------------------------------------------------------------------- forward
def cascaded_sub_decoder_forward(params, x_nchw, num_classes, scale_factor):
    B, C, H, W = x_nchw.shape
    nc = num_classes
    sH, sW = H * scale_factor, W * scale_factor
    HW = H * W
    rows_pad = params['w_cat_t'].shape[0]

    x2 = x_nchw.reshape(B, C, HW)          # contiguous reshape: no transpose/copy
    kernel = _make_kernel(nc, H, W, sH, sW)
    out_sds = jax.ShapeDtypeStruct((B, nc, sH, sW), jnp.float32)

    grid_spec = pltpu.PrefetchScalarGridSpec(
        num_scalar_prefetch=0,
        grid=(B,),
        in_specs=[
            pl.BlockSpec((1, C, HW), lambda b: (b, 0, 0)),             # x (per batch)
            pl.BlockSpec((rows_pad, C), lambda b: (0, 0)),             # concat heads W^T (bf16)
            pl.BlockSpec((rows_pad, 1), lambda b: (0, 0)),             # biases (f32)
            pl.BlockSpec((W, sW), lambda b: (0, 0)),                   # Mw^T (f32)
            pl.BlockSpec((3 * nc * sH, 3 * nc * H), lambda b: (0, 0)),  # blkdiag(Mh) (f32)
        ],
        out_specs=[pl.BlockSpec((1, nc, sH, sW), lambda b: (b, 0, 0, 0))] * 3,
        scratch_shapes=[
            pltpu.VMEM((rows_pad, HW), jnp.float32),     # gated low-res maps
            pltpu.VMEM((3 * nc * H, W), jnp.float32),    # unflattened (group*H, W)
        ],
    )

    m, d, bnd = pl.pallas_call(
        kernel,
        out_shape=[out_sds] * 3,
        grid_spec=grid_spec,
        compiler_params=pltpu.CompilerParams(
            dimension_semantics=("parallel",)),
    )(x2, params['w_cat_t'], params['bias_col'], params['mw_t'], params['mh_blk'])
    return m, d, bnd


# --------------------------------------------------------------------- params
def build_params(key, in_channels, num_classes, H, W, scale_factor):
    nc = num_classes
    ks = jax.random.split(key, 6)
    bound = 1.0 / math.sqrt(in_channels)

    def conv_w(k):
        return jax.random.uniform(k, (in_channels, nc), jnp.float32, -bound, bound)

    def conv_b(k):
        return jax.random.uniform(k, (nc,), jnp.float32, -bound, bound)

    w_map, w_dist, w_bnd = conv_w(ks[0]), conv_w(ks[1]), conv_w(ks[2])
    b_map, b_dist, b_bnd = conv_b(ks[3]), conv_b(ks[4]), conv_b(ks[5])

    rows_pad = _round_up(3 * nc, 8)
    w_cat_t = jnp.zeros((rows_pad, in_channels), jnp.float32)
    w_cat_t = w_cat_t.at[0:nc].set(w_map.T)
    w_cat_t = w_cat_t.at[nc:2 * nc].set(w_dist.T)
    w_cat_t = w_cat_t.at[2 * nc:3 * nc].set(w_bnd.T)

    bias_col = jnp.zeros((rows_pad, 1), jnp.float32)
    bias_col = bias_col.at[0:nc, 0].set(b_map)
    bias_col = bias_col.at[nc:2 * nc, 0].set(b_dist)
    bias_col = bias_col.at[2 * nc:3 * nc, 0].set(b_bnd)

    Mh = _bilinear_matrix_ac(H, H * scale_factor)          # (sH, H)
    Mw = _bilinear_matrix_ac(W, W * scale_factor)          # (sW, W)
    mh_blk = np.kron(np.eye(3 * nc, dtype=np.float32), Mh)  # (3nc*sH, 3nc*H)

    return {
        # kernel operands (weights pre-cast to bf16 once; interp stays f32)
        'w_cat_t': w_cat_t.astype(jnp.bfloat16),
        'bias_col': bias_col,
        'mw_t': jnp.asarray(Mw.T),
        'mh_blk': jnp.asarray(mh_blk),
        # f32 originals for the pure-JAX reference
        'w_map': w_map, 'w_dist': w_dist, 'w_bnd': w_bnd,
        'b_map': b_map, 'b_dist': b_dist, 'b_bnd': b_bnd,
        'mh': jnp.asarray(Mh), 'mw': jnp.asarray(Mw),
    }


# -------------------------------------------------------------- pure-JAX check
def reference_forward(params, x_nchw, scale_factor):
    hp = jax.lax.Precision.HIGHEST
    xn = jnp.transpose(x_nchw, (0, 2, 3, 1)).astype(jnp.float32)      # (B,H,W,C)
    m = jnp.einsum('bhwc,cn->bhwn', xn, params['w_map'], precision=hp) + params['b_map']
    d = (jnp.einsum('bhwc,cn->bhwn', xn, params['w_dist'], precision=hp)
         + params['b_dist']) * jax.nn.sigmoid(m)
    b = (jnp.einsum('bhwc,cn->bhwn', xn, params['w_bnd'], precision=hp)
         + params['b_bnd']) * jax.nn.sigmoid(d)
    Mh, Mw = params['mh'], params['mw']

    def up(t):
        t = jnp.einsum('oh,bhwn->bown', Mh, t, precision=hp)
        return jnp.einsum('pw,bown->bopn', Mw, t, precision=hp)

    b_u = up(b)
    d_u = up(d) + jax.nn.sigmoid(b_u)
    m_u = up(m) + jax.nn.sigmoid(d_u)
    tr = lambda a: jnp.transpose(a, (0, 3, 1, 2))
    return tr(m_u), tr(d_u), tr(b_u)


# ----------------------------------------------------------------------- main
if __name__ == "__main__":
    B, C, H, W = 2, 32, 16, 16
    NUM_CLASSES = 1
    SCALE = 4

    key = jax.random.PRNGKey(0)
    kx, kp = jax.random.split(key)
    x = jax.random.normal(kx, (B, C, H, W), jnp.float32)
    params = build_params(kp, C, NUM_CLASSES, H, W, SCALE)

    fwd = jax.jit(lambda xx: cascaded_sub_decoder_forward(params, xx, NUM_CLASSES, SCALE))
    m_out, d_out, b_out = fwd(x)
    jax.block_until_ready((m_out, d_out, b_out))

    sH, sW = H * SCALE, W * SCALE
    for t in (m_out, d_out, b_out):
        assert t.shape == (B, NUM_CLASSES, sH, sW)
        assert bool(jnp.all(jnp.isfinite(t)))

    # Only remaining precision loss is the bf16 stage-1 MXU operands
    # (stage-2 upsample is pure f32), so the tolerance is much tighter now.
    rm, rd, rb = reference_forward(params, x, SCALE)
    max_err = max(float(jnp.max(jnp.abs(a - r)))
                  for a, r in ((m_out, rm), (d_out, rd), (b_out, rb)))
    assert max_err < 5e-2, f"max abs error too large: {max_err}"

    print("KERNEL_OK")
</pallas_src>

<mosaic_0001>
module attributes {stable_mosaic.version = 11 : i64} {
  func.func @kernel(%arg0: i32, %arg1: memref<1x32x256xf32, #tpu.memory_space<vmem>>, %arg2: memref<8x32xbf16, #tpu.memory_space<vmem>>, %arg3: memref<8x1xf32, #tpu.memory_space<vmem>>, %arg4: memref<16x64xf32, #tpu.memory_space<vmem>>, %arg5: memref<192x48xf32, #tpu.memory_space<vmem>>, %arg6: memref<1x1x64x64xf32, #tpu.memory_space<vmem>>, %arg7: memref<1x1x64x64xf32, #tpu.memory_space<vmem>>, %arg8: memref<1x1x64x64xf32, #tpu.memory_space<vmem>>, %arg9: memref<8x256xf32, #tpu.memory_space<vmem>>, %arg10: memref<48x16xf32, #tpu.memory_space<vmem>>) attributes {dimension_semantics = [#tpu.dimension_semantics<parallel>], iteration_bounds = array<i64: 2>, scalar_prefetch = 0 : i64, scratch_operands = 2 : i64, tpu.core_type = #tpu.core_type<tc>, window_params = [{transform_indices = @transform_0, window_bounds = array<i64: 1, 32, 256>}, {pipeline_mode = #tpu.pipeline_mode<synchronous>, transform_indices = @transform_1, window_bounds = array<i64: 8, 32>}, {pipeline_mode = #tpu.pipeline_mode<synchronous>, transform_indices = @transform_2, window_bounds = array<i64: 8, 1>}, {pipeline_mode = #tpu.pipeline_mode<synchronous>, transform_indices = @transform_3, window_bounds = array<i64: 16, 64>}, {pipeline_mode = #tpu.pipeline_mode<synchronous>, transform_indices = @transform_4, window_bounds = array<i64: 192, 48>}, {transform_indices = @transform_5, window_bounds = array<i64: 1, 1, 64, 64>}, {transform_indices = @transform_6, window_bounds = array<i64: 1, 1, 64, 64>}, {transform_indices = @transform_7, window_bounds = array<i64: 1, 1, 64, 64>}]} {
    %c0 = arith.constant 0 : index
    %c0_0 = arith.constant 0 : index
    %c0_1 = arith.constant 0 : index
    %0 = vector.load %arg1[%c0, %c0_0, %c0_1] : memref<1x32x256xf32, #tpu.memory_space<vmem>>, vector<1x32x256xf32>
    %1 = vector.shape_cast %0 : vector<1x32x256xf32> to vector<32x256xf32>
    %2 = arith.truncf %1 : vector<32x256xf32> to vector<32x256xbf16>
    %c0_2 = arith.constant 0 : index
    %c0_3 = arith.constant 0 : index
    %3 = vector.load %arg2[%c0_2, %c0_3] : memref<8x32xbf16, #tpu.memory_space<vmem>>, vector<8x32xbf16>
    %cst = arith.constant dense<0.000000e+00> : vector<8x256xf32>
    %4 = tpu.matmul %3, %2, %cst {dimension_numbers = #tpu.dot_dimension_numbers<[1], [0], [0], [1], [0, 0, 1, 1], [], []>} : vector<8x32xbf16>, vector<32x256xbf16>, vector<8x256xf32> -> vector<8x256xf32>
    %c0_4 = arith.constant 0 : index
    %c0_5 = arith.constant 0 : index
    %5 = vector.load %arg3[%c0_4, %c0_5] : memref<8x1xf32, #tpu.memory_space<vmem>>, vector<8x1xf32>
    %6 = vector.broadcast %5 : vector<8x1xf32> to vector<8x256xf32>
    %7 = arith.addf %4, %6 : vector<8x256xf32>
    %c0_6 = arith.constant 0 : index
    %c0_7 = arith.constant 0 : index
    %8 = vector.load %arg9[%c0_6, %c0_7] : memref<8x256xf32, #tpu.memory_space<vmem>>, vector<8x256xf32>
    tpu.vector_store %arg9[%c0_6, %c0_7], %7 {strides = array<i32>} : memref<8x256xf32, #tpu.memory_space<vmem>>, vector<8x256xf32>,
    %c0_8 = arith.constant 0 : index
    %c0_9 = arith.constant 0 : index
    %9 = vector.load %arg9[%c0_8, %c0_9] : memref<8x256xf32, #tpu.memory_space<vmem>>, vector<1x256xf32>
    %c1 = arith.constant 1 : index
    %c0_10 = arith.constant 0 : index
    %10 = vector.load %arg9[%c1, %c0_10] : memref<8x256xf32, #tpu.memory_space<vmem>>, vector<1x256xf32>
    %11 = arith.negf %9 : vector<1x256xf32>
    %12 = math.exp %11 : vector<1x256xf32>
    %cst_11 = arith.constant 1.000000e+00 : f32
    %13 = vector.broadcast %cst_11 : f32 to vector<1x256xf32>
    %14 = arith.addf %13, %12 : vector<1x256xf32>
    %15 = arith.divf %13, %14 : vector<1x256xf32>
    %16 = arith.mulf %10, %15 : vector<1x256xf32>
    %c2 = arith.constant 2 : index
    %c0_12 = arith.constant 0 : index
    %17 = vector.load %arg9[%c2, %c0_12] : memref<8x256xf32, #tpu.memory_space<vmem>>, vector<1x256xf32>
    %18 = arith.negf %16 : vector<1x256xf32>
    %19 = math.exp %18 : vector<1x256xf32>
    %cst_13 = arith.constant 1.000000e+00 : f32
    %20 = vector.broadcast %cst_13 : f32 to vector<1x256xf32>
    %21 = arith.addf %20, %19 : vector<1x256xf32>
    %22 = arith.divf %20, %21 : vector<1x256xf32>
    %23 = arith.mulf %17, %22 : vector<1x256xf32>
    %c1_14 = arith.constant 1 : index
    %c0_15 = arith.constant 0 : index
    %24 = vector.load %arg9[%c1_14, %c0_15] : memref<8x256xf32, #tpu.memory_space<vmem>>, vector<1x256xf32>
    tpu.vector_store %arg9[%c1_14, %c0_15], %16 {strides = array<i32>} : memref<8x256xf32, #tpu.memory_space<vmem>>, vector<1x256xf32>,
    %c2_16 = arith.constant 2 : index
    %c0_17 = arith.constant 0 : index
    %25 = vector.load %arg9[%c2_16, %c0_17] : memref<8x256xf32, #tpu.memory_space<vmem>>, vector<1x256xf32>
    tpu.vector_store %arg9[%c2_16, %c0_17], %23 {strides = array<i32>} : memref<8x256xf32, #tpu.memory_space<vmem>>, vector<1x256xf32>,
    %c0_18 = arith.constant 0 : index
    %c0_19 = arith.constant 0 : index
    %26 = vector.load %arg9[%c0_18, %c0_19] : memref<8x256xf32, #tpu.memory_space<vmem>>, vector<1x16xf32>
    %c0_20 = arith.constant 0 : index
    %c0_21 = arith.constant 0 : index
    %27 = vector.load %arg10[%c0_20, %c0_21] : memref<48x16xf32, #tpu.memory_space<vmem>>, vector<1x16xf32>
    tpu.vector_store %arg10[%c0_20, %c0_21], %26 {strides = array<i32>} : memref<48x16xf32, #tpu.memory_space<vmem>>, vector<1x16xf32>,
    %c0_22 = arith.constant 0 : index
    %c16 = arith.constant 16 : index
    %28 = vector.load %arg9[%c0_22, %c16] : memref<8x256xf32, #tpu.memory_space<vmem>>, vector<1x16xf32>
    %c1_23 = arith.constant 1 : index
    %c0_24 = arith.constant 0 : index
    %29 = vector.load %arg10[%c1_23, %c0_24] : memref<48x16xf32, #tpu.memory_space<vmem>>, vector<1x16xf32>
    tpu.vector_store %arg10[%c1_23, %c0_24], %28 {strides = array<i32>} : memref<48x16xf32, #tpu.memory_space<vmem>>, vector<1x16xf32>,
    %c0_25 = arith.constant 0 : index
    %c32 = arith.constant 32 : index
    %30 = vector.load %arg9[%c0_25, %c32] : memref<8x256xf32, #tpu.memory_space<vmem>>, vector<1x16xf32>
    %c2_26 = arith.constant 2 : index
    %c0_27 = arith.constant 0 : index
    %31 = vector.load %arg10[%c2_26, %c0_27] : memref<48x16xf32, #tpu.memory_space<vmem>>, vector<1x16xf32>
    tpu.vector_store %arg10[%c2_26, %c0_27], %30 {strides = array<i32>} : memref<48x16xf32, #tpu.memory_space<vmem>>, vector<1x16xf32>,
    %c0_28 = arith.constant 0 : index
    %c48 = arith.constant 48 : index
    %32 = vector.load %arg9[%c0_28, %c48] : memref<8x256xf32, #tpu.memory_space<vmem>>, vector<1x16xf32>
    %c3 = arith.constant 3 : index
    %c0_29 = arith.constant 0 : index
    %33 = vector.load %arg10[%c3, %c0_29] : memref<48x16xf32, #tpu.memory_space<vmem>>, vector<1x16xf32>
    tpu.vector_store %arg10[%c3, %c0_29], %32 {strides = array<i32>} : memref<48x16xf32, #tpu.memory_space<vmem>>, vector<1x16xf32>,
    %c0_30 = arith.constant 0 : index
    %c64 = arith.constant 64 : index
    %34 = vector.load %arg9[%c0_30, %c64] : memref<8x256xf32, #tpu.memory_space<vmem>>, vector<1x16xf32>
    %c4 = arith.constant 4 : index
    %c0_31 = arith.constant 0 : index
    %35 = vector.load %arg10[%c4, %c0_31] : memref<48x16xf32, #tpu.memory_space<vmem>>, vector<1x16xf32>
    tpu.vector_store %arg10[%c4, %c0_31], %34 {strides = array<i32>} : memref<48x16xf32, #tpu.memory_space<vmem>>, vector<1x16xf32>,
    %c0_32 = arith.constant 0 : index
    %c80 = arith.constant 80 : index
    %36 = vector.load %arg9[%c0_32, %c80] : memref<8x256xf32, #tpu.memory_space<vmem>>, vector<1x16xf32>
    %c5 = arith.constant 5 : index
    %c0_33 = arith.constant 0 : index
    %37 = vector.load %arg10[%c5, %c0_33] : memref<48x16xf32, #tpu.memory_space<vmem>>, vector<1x16xf32>
    tpu.vector_store %arg10[%c5, %c0_33], %36 {strides = array<i32>} : memref<48x16xf32, #tpu.memory_space<vmem>>, vector<1x16xf32>,
    %c0_34 = arith.constant 0 : index
    %c96 = arith.constant 96 : index
    %38 = vector.load %arg9[%c0_34, %c96] : memref<8x256xf32, #tpu.memory_space<vmem>>, vector<1x16xf32>
    %c6 = arith.constant 6 : index
    %c0_35 = arith.constant 0 : index
    %39 = vector.load %arg10[%c6, %c0_35] : memref<48x16xf32, #tpu.memory_space<vmem>>, vector<1x16xf32>
    tpu.vector_store %arg10[%c6, %c0_35], %38 {strides = array<i32>} : memref<48x16xf32, #tpu.memory_space<vmem>>, vector<1x16xf32>,
    %c0_36 = arith.constant 0 : index
    %c112 = arith.constant 112 : index
    %40 = vector.load %arg9[%c0_36, %c112] : memref<8x256xf32, #tpu.memory_space<vmem>>, vector<1x16xf32>
    %c7 = arith.constant 7 : index
    %c0_37 = arith.constant 0 : index
    %41 = vector.load %arg10[%c7, %c0_37] : memref<48x16xf32, #tpu.memory_space<vmem>>, vector<1x16xf32>
    tpu.vector_store %arg10[%c7, %c0_37], %40 {strides = array<i32>} : memref<48x16xf32, #tpu.memory_space<vmem>>, vector<1x16xf32>,
    %c0_38 = arith.constant 0 : index
    %c128 = arith.constant 128 : index
    %42 = vector.load %arg9[%c0_38, %c128] : memref<8x256xf32, #tpu.memory_space<vmem>>, vector<1x16xf32>
    %c8 = arith.constant 8 : index
    %c0_39 = arith.constant 0 : index
    %43 = vector.load %arg10[%c8, %c0_39] : memref<48x16xf32, #tpu.memory_space<vmem>>, vector<1x16xf32>
    tpu.vector_store %arg10[%c8, %c0_39], %42 {strides = array<i32>} : memref<48x16xf32, #tpu.memory_space<vmem>>, vector<1x16xf32>,
    %c0_40 = arith.constant 0 : index
    %c144 = arith.constant 144 : index
    %44 = vector.load %arg9[%c0_40, %c144] : memref<8x256xf32, #tpu.memory_space<vmem>>, vector<1x16xf32>
    %c9 = arith.constant 9 : index
    %c0_41 = arith.constant 0 : index
    %45 = vector.load %arg10[%c9, %c0_41] : memref<48x16xf32, #tpu.memory_space<vmem>>, vector<1x16xf32>
    tpu.vector_store %arg10[%c9, %c0_41], %44 {strides = array<i32>} : memref<48x16xf32, #tpu.memory_space<vmem>>, vector<1x16xf32>,
    %c0_42 = arith.constant 0 : index
    %c160 = arith.constant 160 : index
    %46 = vector.load %arg9[%c0_42, %c160] : memref<8x256xf32, #tpu.memory_space<vmem>>, vector<1x16xf32>
    %c10 = arith.constant 10 : index
    %c0_43 = arith.constant 0 : index
    %47 = vector.load %arg10[%c10, %c0_43] : memref<48x16xf32, #tpu.memory_space<vmem>>, vector<1x16xf32>
    tpu.vector_store %arg10[%c10, %c0_43], %46 {strides = array<i32>} : memref<48x16xf32, #tpu.memory_space<vmem>>, vector<1x16xf32>,
    %c0_44 = arith.constant 0 : index
    %c176 = arith.constant 176 : index
    %48 = vector.load %arg9[%c0_44, %c176] : memref<8x256xf32, #tpu.memory_space<vmem>>, vector<1x16xf32>
    %c11 = arith.constant 11 : index
    %c0_45 = arith.constant 0 : index
    %49 = vector.load %arg10[%c11, %c0_45] : memref<48x16xf32, #tpu.memory_space<vmem>>, vector<1x16xf32>
    tpu.vector_store %arg10[%c11, %c0_45], %48 {strides = array<i32>} : memref<48x16xf32, #tpu.memory_space<vmem>>, vector<1x16xf32>,
    %c0_46 = arith.constant 0 : index
    %c192 = arith.constant 192 : index
    %50 = vector.load %arg9[%c0_46, %c192] : memref<8x256xf32, #tpu.memory_space<vmem>>, vector<1x16xf32>
    %c12 = arith.constant 12 : index
    %c0_47 = arith.constant 0 : index
    %51 = vector.load %arg10[%c12, %c0_47] : memref<48x16xf32, #tpu.memory_space<vmem>>, vector<1x16xf32>
    tpu.vector_store %arg10[%c12, %c0_47], %50 {strides = array<i32>} : memref<48x16xf32, #tpu.memory_space<vmem>>, vector<1x16xf32>,
    %c0_48 = arith.constant 0 : index
    %c208 = arith.constant 208 : index
    %52 = vector.load %arg9[%c0_48, %c208] : memref<8x256xf32, #tpu.memory_space<vmem>>, vector<1x16xf32>
    %c13 = arith.constant 13 : index
    %c0_49 = arith.constant 0 : index
    %53 = vector.load %arg10[%c13, %c0_49] : memref<48x16xf32, #tpu.memory_space<vmem>>, vector<1x16xf32>
    tpu.vector_store %arg10[%c13, %c0_49], %52 {strides = array<i32>} : memref<48x16xf32, #tpu.memory_space<vmem>>, vector<1x16xf32>,
    %c0_50 = arith.constant 0 : index
    %c224 = arith.constant 224 : index
    %54 = vector.load %arg9[%c0_50, %c224] : memref<8x256xf32, #tpu.memory_space<vmem>>, vector<1x16xf32>
    %c14 = arith.constant 14 : index
    %c0_51 = arith.constant 0 : index
    %55 = vector.load %arg10[%c14, %c0_51] : memref<48x16xf32, #tpu.memory_space<vmem>>, vector<1x16xf32>
    tpu.vector_store %arg10[%c14, %c0_51], %54 {strides = array<i32>} : memref<48x16xf32, #tpu.memory_space<vmem>>, vector<1x16xf32>,
    %c0_52 = arith.constant 0 : index
    %c240 = arith.constant 240 : index
    %56 = vector.load %arg9[%c0_52, %c240] : memref<8x256xf32, #tpu.memory_space<vmem>>, vector<1x16xf32>
    %c15 = arith.constant 15 : index
    %c0_53 = arith.constant 0 : index
    %57 = vector.load %arg10[%c15, %c0_53] : memref<48x16xf32, #tpu.memory_space<vmem>>, vector<1x16xf32>
    tpu.vector_store %arg10[%c15, %c0_53], %56 {strides = array<i32>} : memref<48x16xf32, #tpu.memory_space<vmem>>, vector<1x16xf32>,
    %c1_54 = arith.constant 1 : index
    %c0_55 = arith.constant 0 : index
    %58 = vector.load %arg9[%c1_54, %c0_55] : memref<8x256xf32, #tpu.memory_space<vmem>>, vector<1x16xf32>
    %c16_56 = arith.constant 16 : index
    %c0_57 = arith.constant 0 : index
    %59 = vector.load %arg10[%c16_56, %c0_57] : memref<48x16xf32, #tpu.memory_space<vmem>>, vector<1x16xf32>
    tpu.vector_store %arg10[%c16_56, %c0_57], %58 {strides = array<i32>} : memref<48x16xf32, #tpu.memory_space<vmem>>, vector<1x16xf32>,
    %c1_58 = arith.constant 1 : index
    %c16_59 = arith.constant 16 : index
    %60 = vector.load %arg9[%c1_58, %c16_59] : memref<8x256xf32, #tpu.memory_space<vmem>>, vector<1x16xf32>
    %c17 = arith.constant 17 : index
    %c0_60 = arith.constant 0 : index
    %61 = vector.load %arg10[%c17, %c0_60] : memref<48x16xf32, #tpu.memory_space<vmem>>, vector<1x16xf32>
    tpu.vector_store %arg10[%c17, %c0_60], %60 {strides = array<i32>} : memref<48x16xf32, #tpu.memory_space<vmem>>, vector<1x16xf32>,
    %c1_61 = arith.constant 1 : index
    %c32_62 = arith.constant 32 : index
    %62 = vector.load %arg9[%c1_61, %c32_62] : memref<8x256xf32, #tpu.memory_space<vmem>>, vector<1x16xf32>
    %c18 = arith.constant 18 : index
    %c0_63 = arith.constant 0 : index
    %63 = vector.load %arg10[%c18, %c0_63] : memref<48x16xf32, #tpu.memory_space<vmem>>, vector<1x16xf32>
    tpu.vector_store %arg10[%c18, %c0_63], %62 {strides = array<i32>} : memref<48x16xf32, #tpu.memory_space<vmem>>, vector<1x16xf32>,
    %c1_64 = arith.constant 1 : index
    %c48_65 = arith.constant 48 : index
    %64 = vector.load %arg9[%c1_64, %c48_65] : memref<8x256xf32, #tpu.memory_space<vmem>>, vector<1x16xf32>
    %c19 = arith.constant 19 : index
    %c0_66 = arith.constant 0 : index
    %65 = vector.load %arg10[%c19, %c0_66] : memref<48x16xf32, #tpu.memory_space<vmem>>, vector<1x16xf32>
    tpu.vector_store %arg10[%c19, %c0_66], %64 {strides = array<i32>} : memref<48x16xf32, #tpu.memory_space<vmem>>, vector<1x16xf32>,
    %c1_67 = arith.constant 1 : index
    %c64_68 = arith.constant 64 : index
    %66 = vector.load %arg9[%c1_67, %c64_68] : memref<8x256xf32, #tpu.memory_space<vmem>>, vector<1x16xf32>
    %c20 = arith.constant 20 : index
    %c0_69 = arith.constant 0 : index
    %67 = vector.load %arg10[%c20, %c0_69] : memref<48x16xf32, #tpu.memory_space<vmem>>, vector<1x16xf32>
    tpu.vector_store %arg10[%c20, %c0_69], %66 {strides = array<i32>} : memref<48x16xf32, #tpu.memory_space<vmem>>, vector<1x16xf32>,
    %c1_70 = arith.constant 1 : index
    %c80_71 = arith.constant 80 : index
    %68 = vector.load %arg9[%c1_70, %c80_71] : memref<8x256xf32, #tpu.memory_space<vmem>>, vector<1x16xf32>
    %c21 = arith.constant 21 : index
    %c0_72 = arith.constant 0 : index
    %69 = vector.load %arg10[%c21, %c0_72] : memref<48x16xf32, #tpu.memory_space<vmem>>, vector<1x16xf32>
    tpu.vector_store %arg10[%c21, %c0_72], %68 {strides = array<i32>} : memref<48x16xf32, #tpu.memory_space<vmem>>, vector<1x16xf32>,
    %c1_73 = arith.constant 1 : index
    %c96_74 = arith.constant 96 : index
    %70 = vector.load %arg9[%c1_73, %c96_74] : memref<8x256xf32, #tpu.memory_space<vmem>>, vector<1x16xf32>
    %c22 = arith.constant 22 : index
    %c0_75 = arith.constant 0 : index
    %71 = vector.load %arg10[%c22, %c0_75] : memref<48x16xf32, #tpu.memory_space<vmem>>, vector<1x16xf32>
    tpu.vector_store %arg10[%c22, %c0_75], %70 {strides = array<i32>} : memref<48x16xf32, #tpu.memory_space<vmem>>, vector<1x16xf32>,
    %c1_76 = arith.constant 1 : index
    %c112_77 = arith.constant 112 : index
    %72 = vector.load %arg9[%c1_76, %c112_77] : memref<8x256xf32, #tpu.memory_space<vmem>>, vector<1x16xf32>
    %c23 = arith.constant 23 : index
    %c0_78 = arith.constant 0 : index
    %73 = vector.load %arg10[%c23, %c0_78] : memref<48x16xf32, #tpu.memory_space<vmem>>, vector<1x16xf32>
    tpu.vector_store %arg10[%c23, %c0_78], %72 {strides = array<i32>} : memref<48x16xf32, #tpu.memory_space<vmem>>, vector<1x16xf32>,
    %c1_79 = arith.constant 1 : index
    %c128_80 = arith.constant 128 : index
    %74 = vector.load %arg9[%c1_79, %c128_80] : memref<8x256xf32, #tpu.memory_space<vmem>>, vector<1x16xf32>
    %c24 = arith.constant 24 : index
    %c0_81 = arith.constant 0 : index
    %75 = vector.load %arg10[%c24, %c0_81] : memref<48x16xf32, #tpu.memory_space<vmem>>, vector<1x16xf32>
    tpu.vector_store %arg10[%c24, %c0_81], %74 {strides = array<i32>} : memref<48x16xf32, #tpu.memory_space<vmem>>, vector<1x16xf32>,
    %c1_82 = arith.constant 1 : index
    %c144_83 = arith.constant 144 : index
    %76 = vector.load %arg9[%c1_82, %c144_83] : memref<8x256xf32, #tpu.memory_space<vmem>>, vector<1x16xf32>
    %c25 = arith.constant 25 : index
    %c0_84 = arith.constant 0 : index
    %77 = vector.load %arg10[%c25, %c0_84] : memref<48x16xf32, #tpu.memory_space<vmem>>, vector<1x16xf32>
    tpu.vector_store %arg10[%c25, %c0_84], %76 {strides = array<i32>} : memref<48x16xf32, #tpu.memory_space<vmem>>, vector<1x16xf32>,
    %c1_85 = arith.constant 1 : index
    %c160_86 = arith.constant 160 : index
    %78 = vector.load %arg9[%c1_85, %c160_86] : memref<8x256xf32, #tpu.memory_space<vmem>>, vector<1x16xf32>
    %c26 = arith.constant 26 : index
    %c0_87 = arith.constant 0 : index
    %79 = vector.load %arg10[%c26, %c0_87] : memref<48x16xf32, #tpu.memory_space<vmem>>, vector<1x16xf32>
    tpu.vector_store %arg10[%c26, %c0_87], %78 {strides = array<i32>} : memref<48x16xf32, #tpu.memory_space<vmem>>, vector<1x16xf32>,
    %c1_88 = arith.constant 1 : index
    %c176_89 = arith.constant 176 : index
    %80 = vector.load %arg9[%c1_88, %c176_89] : memref<8x256xf32, #tpu.memory_space<vmem>>, vector<1x16xf32>
    %c27 = arith.constant 27 : index
    %c0_90 = arith.constant 0 : index
    %81 = vector.load %arg10[%c27, %c0_90] : memref<48x16xf32, #tpu.memory_space<vmem>>, vector<1x16xf32>
    tpu.vector_store %arg10[%c27, %c0_90], %80 {strides = array<i32>} : memref<48x16xf32, #tpu.memory_space<vmem>>, vector<1x16xf32>,
    %c1_91 = arith.constant 1 : index
    %c192_92 = arith.constant 192 : index
    %82 = vector.load %arg9[%c1_91, %c192_92] : memref<8x256xf32, #tpu.memory_space<vmem>>, vector<1x16xf32>
    %c28 = arith.constant 28 : index
    %c0_93 = arith.constant 0 : index
    %83 = vector.load %arg10[%c28, %c0_93] : memref<48x16xf32, #tpu.memory_space<vmem>>, vector<1x16xf32>
    tpu.vector_store %arg10[%c28, %c0_93], %82 {strides = array<i32>} : memref<48x16xf32, #tpu.memory_space<vmem>>, vector<1x16xf32>,
    %c1_94 = arith.constant 1 : index
    %c208_95 = arith.constant 208 : index
    %84 = vector.load %arg9[%c1_94, %c208_95] : memref<8x256xf32, #tpu.memory_space<vmem>>, vector<1x16xf32>
    %c29 = arith.constant 29 : index
    %c0_96 = arith.constant 0 : index
    %85 = vector.load %arg10[%c29, %c0_96] : memref<48x16xf32, #tpu.memory_space<vmem>>, vector<1x16xf32>
    tpu.vector_store %arg10[%c29, %c0_96], %84 {strides = array<i32>} : memref<48x16xf32, #tpu.memory_space<vmem>>, vector<1x16xf32>,
    %c1_97 = arith.constant 1 : index
    %c224_98 = arith.constant 224 : index
    %86 = vector.load %arg9[%c1_97, %c224_98] : memref<8x256xf32, #tpu.memory_space<vmem>>, vector<1x16xf32>
    %c30 = arith.constant 30 : index
    %c0_99 = arith.constant 0 : index
    %87 = vector.load %arg10[%c30, %c0_99] : memref<48x16xf32, #tpu.memory_space<vmem>>, vector<1x16xf32>
    tpu.vector_store %arg10[%c30, %c0_99], %86 {strides = array<i32>} : memref<48x16xf32, #tpu.memory_space<vmem>>, vector<1x16xf32>,
    %c1_100 = arith.constant 1 : index
    %c240_101 = arith.constant 240 : index
    %88 = vector.load %arg9[%c1_100, %c240_101] : memref<8x256xf32, #tpu.memory_space<vmem>>, vector<1x16xf32>
    %c31 = arith.constant 31 : index
    %c0_102 = arith.constant 0 : index
    %89 = vector.load %arg10[%c31, %c0_102] : memref<48x16xf32, #tpu.memory_space<vmem>>, vector<1x16xf32>
    tpu.vector_store %arg10[%c31, %c0_102], %88 {strides = array<i32>} : memref<48x16xf32, #tpu.memory_space<vmem>>, vector<1x16xf32>,
    %c2_103 = arith.constant 2 : index
    %c0_104 = arith.constant 0 : index
    %90 = vector.load %arg9[%c2_103, %c0_104] : memref<8x256xf32, #tpu.memory_space<vmem>>, vector<1x16xf32>
    %c32_105 = arith.constant 32 : index
    %c0_106 = arith.constant 0 : index
    %91 = vector.load %arg10[%c32_105, %c0_106] : memref<48x16xf32, #tpu.memory_space<vmem>>, vector<1x16xf32>
    tpu.vector_store %arg10[%c32_105, %c0_106], %90 {strides = array<i32>} : memref<48x16xf32, #tpu.memory_space<vmem>>, vector<1x16xf32>,
    %c2_107 = arith.constant 2 : index
    %c16_108 = arith.constant 16 : index
    %92 = vector.load %arg9[%c2_107, %c16_108] : memref<8x256xf32, #tpu.memory_space<vmem>>, vector<1x16xf32>
    %c33 = arith.constant 33 : index
    %c0_109 = arith.constant 0 : index
    %93 = vector.load %arg10[%c33, %c0_109] : memref<48x16xf32, #tpu.memory_space<vmem>>, vector<1x16xf32>
    tpu.vector_store %arg10[%c33, %c0_109], %92 {strides = array<i32>} : memref<48x16xf32, #tpu.memory_space<vmem>>, vector<1x16xf32>,
    %c2_110 = arith.constant 2 : index
    %c32_111 = arith.constant 32 : index
    %94 = vector.load %arg9[%c2_110, %c32_111] : memref<8x256xf32, #tpu.memory_space<vmem>>, vector<1x16xf32>
    %c34 = arith.constant 34 : index
    %c0_112 = arith.constant 0 : index
    %95 = vector.load %arg10[%c34, %c0_112] : memref<48x16xf32, #tpu.memory_space<vmem>>, vector<1x16xf32>
    tpu.vector_store %arg10[%c34, %c0_112], %94 {strides = array<i32>} : memref<48x16xf32, #tpu.memory_space<vmem>>, vector<1x16xf32>,
    %c2_113 = arith.constant 2 : index
    %c48_114 = arith.constant 48 : index
    %96 = vector.load %arg9[%c2_113, %c48_114] : memref<8x256xf32, #tpu.memory_space<vmem>>, vector<1x16xf32>
    %c35 = arith.constant 35 : index
    %c0_115 = arith.constant 0 : index
    %97 = vector.load %arg10[%c35, %c0_115] : memref<48x16xf32, #tpu.memory_space<vmem>>, vector<1x16xf32>
    tpu.vector_store %arg10[%c35, %c0_115], %96 {strides = array<i32>} : memref<48x16xf32, #tpu.memory_space<vmem>>, vector<1x16xf32>,
    %c2_116 = arith.constant 2 : index
    %c64_117 = arith.constant 64 : index
    %98 = vector.load %arg9[%c2_116, %c64_117] : memref<8x256xf32, #tpu.memory_space<vmem>>, vector<1x16xf32>
    %c36 = arith.constant 36 : index
    %c0_118 = arith.constant 0 : index
    %99 = vector.load %arg10[%c36, %c0_118] : memref<48x16xf32, #tpu.memory_space<vmem>>, vector<1x16xf32>
    tpu.vector_store %arg10[%c36, %c0_118], %98 {strides = array<i32>} : memref<48x16xf32, #tpu.memory_space<vmem>>, vector<1x16xf32>,
    %c2_119 = arith.constant 2 : index
    %c80_120 = arith.constant 80 : index
    %100 = vector.load %arg9[%c2_119, %c80_120] : memref<8x256xf32, #tpu.memory_space<vmem>>, vector<1x16xf32>
    %c37 = arith.constant 37 : index
    %c0_121 = arith.constant 0 : index
    %101 = vector.load %arg10[%c37, %c0_121] : memref<48x16xf32, #tpu.memory_space<vmem>>, vector<1x16xf32>
    tpu.vector_store %arg10[%c37, %c0_121], %100 {strides = array<i32>} : memref<48x16xf32, #tpu.memory_space<vmem>>, vector<1x16xf32>,
    %c2_122 = arith.constant 2 : index
    %c96_123 = arith.constant 96 : index
    %102 = vector.load %arg9[%c2_122, %c96_123] : memref<8x256xf32, #tpu.memory_space<vmem>>, vector<1x16xf32>
    %c38 = arith.constant 38 : index
    %c0_124 = arith.constant 0 : index
    %103 = vector.load %arg10[%c38, %c0_124] : memref<48x16xf32, #tpu.memory_space<vmem>>, vector<1x16xf32>
    tpu.vector_store %arg10[%c38, %c0_124], %102 {strides = array<i32>} : memref<48x16xf32, #tpu.memory_space<vmem>>, vector<1x16xf32>,
    %c2_125 = arith.constant 2 : index
    %c112_126 = arith.constant 112 : index
    %104 = vector.load %arg9[%c2_125, %c112_126] : memref<8x256xf32, #tpu.memory_space<vmem>>, vector<1x16xf32>
    %c39 = arith.constant 39 : index
    %c0_127 = arith.constant 0 : index
    %105 = vector.load %arg10[%c39, %c0_127] : memref<48x16xf32, #tpu.memory_space<vmem>>, vector<1x16xf32>
    tpu.vector_store %arg10[%c39, %c0_127], %104 {strides = array<i32>} : memref<48x16xf32, #tpu.memory_space<vmem>>, vector<1x16xf32>,
    %c2_128 = arith.constant 2 : index
    %c128_129 = arith.constant 128 : index
    %106 = vector.load %arg9[%c2_128, %c128_129] : memref<8x256xf32, #tpu.memory_space<vmem>>, vector<1x16xf32>
    %c40 = arith.constant 40 : index
    %c0_130 = arith.constant 0 : index
    %107 = vector.load %arg10[%c40, %c0_130] : memref<48x16xf32, #tpu.memory_space<vmem>>, vector<1x16xf32>
    tpu.vector_store %arg10[%c40, %c0_130], %106 {strides = array<i32>} : memref<48x16xf32, #tpu.memory_space<vmem>>, vector<1x16xf32>,
    %c2_131 = arith.constant 2 : index
    %c144_132 = arith.constant 144 : index
    %108 = vector.load %arg9[%c2_131, %c144_132] : memref<8x256xf32, #tpu.memory_space<vmem>>, vector<1x16xf32>
    %c41 = arith.constant 41 : index
    %c0_133 = arith.constant 0 : index
    %109 = vector.load %arg10[%c41, %c0_133] : memref<48x16xf32, #tpu.memory_space<vmem>>, vector<1x16xf32>
    tpu.vector_store %arg10[%c41, %c0_133], %108 {strides = array<i32>} : memref<48x16xf32, #tpu.memory_space<vmem>>, vector<1x16xf32>,
    %c2_134 = arith.constant 2 : index
    %c160_135 = arith.constant 160 : index
    %110 = vector.load %arg9[%c2_134, %c160_135] : memref<8x256xf32, #tpu.memory_space<vmem>>, vector<1x16xf32>
    %c42 = arith.constant 42 : index
    %c0_136 = arith.constant 0 : index
    %111 = vector.load %arg10[%c42, %c0_136] : memref<48x16xf32, #tpu.memory_space<vmem>>, vector<1x16xf32>
    tpu.vector_store %arg10[%c42, %c0_136], %110 {strides = array<i32>} : memref<48x16xf32, #tpu.memory_space<vmem>>, vector<1x16xf32>,
    %c2_137 = arith.constant 2 : index
    %c176_138 = arith.constant 176 : index
    %112 = vector.load %arg9[%c2_137, %c176_138] : memref<8x256xf32, #tpu.memory_space<vmem>>, vector<1x16xf32>
    %c43 = arith.constant 43 : index
    %c0_139 = arith.constant 0 : index
    %113 = vector.load %arg10[%c43, %c0_139] : memref<48x16xf32, #tpu.memory_space<vmem>>, vector<1x16xf32>
    tpu.vector_store %arg10[%c43, %c0_139], %112 {strides = array<i32>} : memref<48x16xf32, #tpu.memory_space<vmem>>, vector<1x16xf32>,
    %c2_140 = arith.constant 2 : index
    %c192_141 = arith.constant 192 : index
    %114 = vector.load %arg9[%c2_140, %c192_141] : memref<8x256xf32, #tpu.memory_space<vmem>>, vector<1x16xf32>
    %c44 = arith.constant 44 : index
    %c0_142 = arith.constant 0 : index
    %115 = vector.load %arg10[%c44, %c0_142] : memref<48x16xf32, #tpu.memory_space<vmem>>, vector<1x16xf32>
    tpu.vector_store %arg10[%c44, %c0_142], %114 {strides = array<i32>} : memref<48x16xf32, #tpu.memory_space<vmem>>, vector<1x16xf32>,
    %c2_143 = arith.constant 2 : index
    %c208_144 = arith.constant 208 : index
    %116 = vector.load %arg9[%c2_143, %c208_144] : memref<8x256xf32, #tpu.memory_space<vmem>>, vector<1x16xf32>
    %c45 = arith.constant 45 : index
    %c0_145 = arith.constant 0 : index
    %117 = vector.load %arg10[%c45, %c0_145] : memref<48x16xf32, #tpu.memory_space<vmem>>, vector<1x16xf32>
    tpu.vector_store %arg10[%c45, %c0_145], %116 {strides = array<i32>} : memref<48x16xf32, #tpu.memory_space<vmem>>, vector<1x16xf32>,
    %c2_146 = arith.constant 2 : index
    %c224_147 = arith.constant 224 : index
    %118 = vector.load %arg9[%c2_146, %c224_147] : memref<8x256xf32, #tpu.memory_space<vmem>>, vector<1x16xf32>
    %c46 = arith.constant 46 : index
    %c0_148 = arith.constant 0 : index
    %119 = vector.load %arg10[%c46, %c0_148] : memref<48x16xf32, #tpu.memory_space<vmem>>, vector<1x16xf32>
    tpu.vector_store %arg10[%c46, %c0_148], %118 {strides = array<i32>} : memref<48x16xf32, #tpu.memory_space<vmem>>, vector<1x16xf32>,
    %c2_149 = arith.constant 2 : index
    %c240_150 = arith.constant 240 : index
    %120 = vector.load %arg9[%c2_149, %c240_150] : memref<8x256xf32, #tpu.memory_space<vmem>>, vector<1x16xf32>
    %c47 = arith.constant 47 : index
    %c0_151 = arith.constant 0 : index
    %121 = vector.load %arg10[%c47, %c0_151] : memref<48x16xf32, #tpu.memory_space<vmem>>, vector<1x16xf32>
    tpu.vector_store %arg10[%c47, %c0_151], %120 {strides = array<i32>} : memref<48x16xf32, #tpu.memory_space<vmem>>, vector<1x16xf32>,
    %c0_152 = arith.constant 0 : index
    %c0_153 = arith.constant 0 : index
    %122 = vector.load %arg10[%c0_152, %c0_153] : memref<48x16xf32, #tpu.memory_space<vmem>>, vector<48x16xf32>
    %c0_154 = arith.constant 0 : index
    %c0_155 = arith.constant 0 : index
    %123 = vector.load %arg4[%c0_154, %c0_155] : memref<16x64xf32, #tpu.memory_space<vmem>>, vector<16x64xf32>
    %cst_156 = arith.constant dense<0.000000e+00> : vector<48x64xf32>
    %124 = tpu.matmul %122, %123, %cst_156 {dimension_numbers = #tpu.dot_dimension_numbers<[1], [0], [0], [1], [0, 0, 1, 1], [], []>} : vector<48x16xf32>, vector<16x64xf32>, vector<48x64xf32> -> vector<48x64xf32>
    %c0_157 = arith.constant 0 : index
    %c0_158 = arith.constant 0 : index
    %125 = vector.load %arg5[%c0_157, %c0_158] : memref<192x48xf32, #tpu.memory_space<vmem>>, vector<192x48xf32>
    %cst_159 = arith.constant dense<0.000000e+00> : vector<192x64xf32>
    %126 = tpu.matmul %125, %124, %cst_159 {dimension_numbers = #tpu.dot_dimension_numbers<[1], [0], [0], [1], [0, 0, 1, 1], [], []>} : vector<192x48xf32>, vector<48x64xf32>, vector<192x64xf32> -> vector<192x64xf32>
    %127 = vector.extract_strided_slice %126 {offsets = [128, 0], sizes = [64, 64], strides = [1, 1]} : vector<192x64xf32> to vector<64x64xf32>
    %128 = vector.extract_strided_slice %126 {offsets = [64, 0], sizes = [64, 64], strides = [1, 1]} : vector<192x64xf32> to vector<64x64xf32>
    %129 = arith.negf %127 : vector<64x64xf32>
    %130 = math.exp %129 : vector<64x64xf32>
    %cst_160 = arith.constant 1.000000e+00 : f32
    %131 = vector.broadcast %cst_160 : f32 to vector<64x64xf32>
    %132 = arith.addf %131, %130 : vector<64x64xf32>
    %133 = arith.divf %131, %132 : vector<64x64xf32>
    %134 = arith.addf %128, %133 : vector<64x64xf32>
    %135 = vector.extract_strided_slice %126 {offsets = [0, 0], sizes = [64, 64], strides = [1, 1]} : vector<192x64xf32> to vector<64x64xf32>
    %136 = arith.negf %134 : vector<64x64xf32>
    %137 = math.exp %136 : vector<64x64xf32>
    %cst_161 = arith.constant 1.000000e+00 : f32
    %138 = vector.broadcast %cst_161 : f32 to vector<64x64xf32>
    %139 = arith.addf %138, %137 : vector<64x64xf32>
    %140 = arith.divf %138, %139 : vector<64x64xf32>
    %141 = arith.addf %135, %140 : vector<64x64xf32>
    %c0_162 = arith.constant 0 : index
    %c0_163 = arith.constant 0 : index
    %c0_164 = arith.constant 0 : index
    %c0_165 = arith.constant 0 : index
    %142 = vector.load %arg6[%c0_162, %c0_163, %c0_164, %c0_165] : memref<1x1x64x64xf32, #tpu.memory_space<vmem>>, vector<1x1x64x64xf32>
    %143 = vector.shape_cast %142 : vector<1x1x64x64xf32> to vector<64x64xf32>
    %144 = vector.shape_cast %141 : vector<64x64xf32> to vector<1x1x64x64xf32>
    tpu.vector_store %arg6[%c0_162, %c0_163, %c0_164, %c0_165], %144 {strides = array<i32>} : memref<1x1x64x64xf32, #tpu.memory_space<vmem>>, vector<1x1x64x64xf32>,
    %c0_166 = arith.constant 0 : index
    %c0_167 = arith.constant 0 : index
    %c0_168 = arith.constant 0 : index
    %c0_169 = arith.constant 0 : index
    %145 = vector.load %arg7[%c0_166, %c0_167, %c0_168, %c0_169] : memref<1x1x64x64xf32, #tpu.memory_space<vmem>>, vector<1x1x64x64xf32>
    %146 = vector.shape_cast %145 : vector<1x1x64x64xf32> to vector<64x64xf32>
    %147 = vector.shape_cast %134 : vector<64x64xf32> to vector<1x1x64x64xf32>
    tpu.vector_store %arg7[%c0_166, %c0_167, %c0_168, %c0_169], %147 {strides = array<i32>} : memref<1x1x64x64xf32, #tpu.memory_space<vmem>>, vector<1x1x64x64xf32>,
    %c0_170 = arith.constant 0 : index
    %c0_171 = arith.constant 0 : index
    %c0_172 = arith.constant 0 : index
    %c0_173 = arith.constant 0 : index
    %148 = vector.load %arg8[%c0_170, %c0_171, %c0_172, %c0_173] : memref<1x1x64x64xf32, #tpu.memory_space<vmem>>, vector<1x1x64x64xf32>
    %149 = vector.shape_cast %148 : vector<1x1x64x64xf32> to vector<64x64xf32>
    %150 = vector.shape_cast %127 : vector<64x64xf32> to vector<1x1x64x64xf32>
    tpu.vector_store %arg8[%c0_170, %c0_171, %c0_172, %c0_173], %150 {strides = array<i32>} : memref<1x1x64x64xf32, #tpu.memory_space<vmem>>, vector<1x1x64x64xf32>,
    return
  }
  func.func @transform_0(%arg0: i32) -> (i32, i32, i32) {
    %c0_i32 = arith.constant 0 : i32
    %c0_i32_0 = arith.constant 0 : i32
    %c0_i32_1 = arith.constant 0 : i32
    return %arg0, %c0_i32, %c0_i32_0 : i32, i32, i32
  }
  func.func @transform_1(%arg0: i32) -> (i32, i32) {
    %c0_i32 = arith.constant 0 : i32
    %c0_i32_0 = arith.constant 0 : i32
    %c0_i32_1 = arith.constant 0 : i32
    return %c0_i32, %c0_i32_0 : i32, i32
  }
  func.func @transform_2(%arg0: i32) -> (i32, i32) {
    %c0_i32 = arith.constant 0 : i32
    %c0_i32_0 = arith.constant 0 : i32
    %c0_i32_1 = arith.constant 0 : i32
    return %c0_i32, %c0_i32_0 : i32, i32
  }
  func.func @transform_3(%arg0: i32) -> (i32, i32) {
    %c0_i32 = arith.constant 0 : i32
    %c0_i32_0 = arith.constant 0 : i32
    %c0_i32_1 = arith.constant 0 : i32
    return %c0_i32, %c0_i32_0 : i32, i32
  }
  func.func @transform_4(%arg0: i32) -> (i32, i32) {
    %c0_i32 = arith.constant 0 : i32
    %c0_i32_0 = arith.constant 0 : i32
    %c0_i32_1 = arith.constant 0 : i32
    return %c0_i32, %c0_i32_0 : i32, i32
  }
  func.func @transform_5(%arg0: i32) -> (i32, i32, i32, i32) {
    %c0_i32 = arith.constant 0 : i32
    %c0_i32_0 = arith.constant 0 : i32
    %c0_i32_1 = arith.constant 0 : i32
    %c0_i32_2 = arith.constant 0 : i32
    return %arg0, %c0_i32, %c0_i32_0, %c0_i32_1 : i32, i32, i32, i32
  }
  func.func @transform_6(%arg0: i32) -> (i32, i32, i32, i32) {
    %c0_i32 = arith.constant 0 : i32
    %c0_i32_0 = arith.constant 0 : i32
    %c0_i32_1 = arith.constant 0 : i32
    %c0_i32_2 = arith.constant 0 : i32
    return %arg0, %c0_i32, %c0_i32_0, %c0_i32_1 : i32, i32, i32, i32
  }
  func.func @transform_7(%arg0: i32) -> (i32, i32, i32, i32) {
    %c0_i32 = arith.constant 0 : i32
    %c0_i32_0 = arith.constant 0 : i32
    %c0_i32_1 = arith.constant 0 : i32
    %c0_i32_2 = arith.constant 0 : i32
    return %arg0, %c0_i32, %c0_i32_0, %c0_i32_1 : i32, i32, i32, i32
  }
}

</mosaic_0001>

<llo_original>
// kernel: _lambda_.1
$region0: #{_lambda_.1}
  #allocation0 [shape = 'u32[]', space=smem, size = 0x4, offset = 0x4, fixed_abs, tag = 'smem constant byte address 0x4 - core index']
  #allocation1 [shape = 'u32[144,128]{1,0:T(1,128)}', space=vmem, size = 0x12000, scoped, tag = 'internal scratch']
  #allocation2 [shape = 'f32[8,256]{1,0:T(8,128)}', space=vmem, size = 0x2000, scoped, tag = 'scratch operand']
  #allocation3 [shape = 'f32[48,16]{1,0:T(8,128)}', space=vmem, size = 0x6000, scoped, tag = 'scratch operand']
  %s0 = inlined_call_operand.vmem [shape: f32[2,32,256], index: 0, kind: input, shape index: {}]
  %s1 = inlined_call_operand.vmem [shape: bf16[8,32], index: 1, kind: input, shape index: {}]
  %s2 = inlined_call_operand.vmem [shape: f32[8,1], index: 2, kind: input, shape index: {}]
  %s3 = inlined_call_operand.vmem [shape: f32[16,64], index: 3, kind: input, shape index: {}]
  %s4 = inlined_call_operand.vmem [shape: f32[192,48], index: 4, kind: input, shape index: {}]
  %s5 = inlined_call_operand.hbm [shape: f32[2,1,64,64], index: 5, kind: output, shape index: {0}]
  %s6 = inlined_call_operand.hbm [shape: f32[2,1,64,64], index: 6, kind: output, shape index: {1}]
  %s7 = inlined_call_operand.hbm [shape: f32[2,1,64,64], index: 7, kind: output, shape index: {2}]
  %8 = xla_tuple %s5, %s6, %s7
  %s9 = sld [smem:[#allocation0]]
  $region69: #{_lambda_.1} parent=0
    _
  %s11 = ssub.s32 1, %s9
  %s12 = scalar_select 0, %s11, %s9
  $region1: #{_lambda_.1} parent=0
    #allocation4 [shape = 'u8[65536]{0}', space=vmem, size = 0x10000, scoped, tag = 'output window, operand 0']
    #allocation5 [shape = 's32[2]{0}', space=sflag, size = 0x8, scoped, tag = 'scoped memory for _lambda_.1']
    #allocation6 [shape = 'u8[65536]{0}', space=vmem, size = 0x10000, scoped, tag = 'output window, operand 1']
    #allocation7 [shape = 's32[2]{0}', space=sflag, size = 0x8, scoped, tag = 'scoped memory for _lambda_.1']
    #allocation8 [shape = 'u8[65536]{0}', space=vmem, size = 0x10000, scoped, tag = 'output window, operand 2']
    %13 = vsyncpa [#allocation5], 0
    %s14 = scalar_lea.sflag [#allocation5], 1
    %15 = vsyncpa %s14, 0
    %16 = vsyncpa [#allocation7], 0
    %s17 = scalar_lea.sflag [#allocation7], 1
    %18 = vsyncpa %s17, 0
    loop: start=0, step=1, limit=4
    $region2: #{_lambda_.1} parent=1 // loop_pre_header
      _
    $region3: #{_lambda_.1} parent=1 // loop_header
      %s20 = sphi 0, %s24
      %p21 = scmp.ge.s32.totalorder %s20, 4
      %s30 = sphi 0, %s32
      %s33 = sphi 0, %s30
      %s34 = sphi 0, %s33
      %s50 = sphi 0, %s34
      %s54 = sphi 0, %s54
      %s56 = sphi 0, %s54
      %s57 = sphi 0, %s56
      %s71 = sphi 0, %s57
      %s75 = sphi 0, %s75
      %s77 = sphi 0, %s75
      %s78 = sphi 0, %s77
      %s92 = sphi 0, %s78
      %s96 = sphi 0, %s96
      %s98 = sphi 0, %s96
      %s99 = sphi 0, %s98
      %s113 = sphi 0, %s99
      %s117 = sphi 0, %s117
      %s119 = sphi 0, %s117
      %s120 = sphi 0, %s119
      %s134 = sphi 0, %s120
      %s140 = sphi 0, %s142
      %s143 = sphi 0, %s140
      %s144 = sphi 0, %s143
      %s160 = sphi 0, %s144
      %s166 = sphi 0, %s168
      %s169 = sphi 0, %s166
      %s170 = sphi 0, %s169
      %s186 = sphi 0, %s170
      %s192 = sphi 0, %s194
      %s195 = sphi 0, %s192
      %s196 = sphi 0, %s195
      %s212 = sphi 0, %s196
    $region4: #{_lambda_.1} parent=1 // loop_header_branch
      %23 = sbr.rel (%p21) target = $region8
    $region5: #{_lambda_.1} parent=1 // loop_body
      %s25 = ssub.s32 %s20, 1
      %s26 = ssub.s32 %s20, 2
      %s27 = sadd.s32 %s20, 1
      %s28 = ssub.s32 %s20, %s27
      %p29 = scmp.eq.s32.totalorder %s28, 0
      %s31 = sadd.s32 %s30, 1
      %s32 = scalar_select %p29, %s30, %s31
      %p35 = pneg %p29
      %p36 = scmp.eq.s32.totalorder %s20, 1
      %p37 = por %p35, %p36
      %p38 = scmp.ne.s32.totalorder %s30, %s33
      %p39 = scmp.eq.s32.totalorder %s20, 0
      %p40 = por %p38, %p39
      %p41 = scmp.ne.s32.totalorder %s30, %s33
      %p42 = scmp.eq.s32.totalorder %s25, 1
      %p43 = por %p41, %p42
      %p44 = scmp.ne.s32.totalorder %s33, %s34
      %p45 = scmp.eq.s32.totalorder %s25, 0
      %p46 = por %p44, %p45
      %p47 = scmp.ne.s32.totalorder %s33, %s34
      %p48 = scmp.eq.s32.totalorder %s26, 1
      %p49 = por %p47, %p48
      %p51 = scmp.ne.s32.totalorder %s34, %s50
      %p52 = scmp.eq.s32.totalorder %s26, 0
      %p53 = por %p51, %p52
      %s55 = sadd.s32 %s54, 1
      %p58 = scmp.eq.s32.totalorder %s20, 1
      %p59 = scmp.ne.s32.totalorder %s54, %s56
      %p60 = scmp.eq.s32.totalorder %s20, 0
      %p61 = por %p59, %p60
      %p62 = scmp.ne.s32.totalorder %s54, %s56
      %p63 = scmp.eq.s32.totalorder %s25, 1
      %p64 = por %p62, %p63
      %p65 = scmp.ne.s32.totalorder %s56, %s57
      %p66 = scmp.eq.s32.totalorder %s25, 0
      %p67 = por %p65, %p66
      %p68 = scmp.ne.s32.totalorder %s56, %s57
      %p69 = scmp.eq.s32.totalorder %s26, 1
      %p70 = por %p68, %p69
      %p72 = scmp.ne.s32.totalorder %s57, %s71
      %p73 = scmp.eq.s32.totalorder %s26, 0
      %p74 = por %p72, %p73
      %s76 = sadd.s32 %s75, 1
      %p79 = scmp.eq.s32.totalorder %s20, 1
      %p80 = scmp.ne.s32.totalorder %s75, %s77
      %p81 = scmp.eq.s32.totalorder %s20, 0
      %p82 = por %p80, %p81
      %p83 = scmp.ne.s32.totalorder %s75, %s77
      %p84 = scmp.eq.s32.totalorder %s25, 1
      %p85 = por %p83, %p84
      %p86 = scmp.ne.s32.totalorder %s77, %s78
      %p87 = scmp.eq.s32.totalorder %s25, 0
      %p88 = por %p86, %p87
      %p89 = scmp.ne.s32.totalorder %s77, %s78
      %p90 = scmp.eq.s32.totalorder %s26, 1
      %p91 = por %p89, %p90
      %p93 = scmp.ne.s32.totalorder %s78, %s92
      %p94 = scmp.eq.s32.totalorder %s26, 0
      %p95 = por %p93, %p94
      %s97 = sadd.s32 %s96, 1
      %p100 = scmp.eq.s32.totalorder %s20, 1
      %p101 = scmp.ne.s32.totalorder %s96, %s98
      %p102 = scmp.eq.s32.totalorder %s20, 0
      %p103 = por %p101, %p102
      %p104 = scmp.ne.s32.totalorder %s96, %s98
      %p105 = scmp.eq.s32.totalorder %s25, 1
      %p106 = por %p104, %p105
      %p107 = scmp.ne.s32.totalorder %s98, %s99
      %p108 = scmp.eq.s32.totalorder %s25, 0
      %p109 = por %p107, %p108
      %p110 = scmp.ne.s32.totalorder %s98, %s99
      %p111 = scmp.eq.s32.totalorder %s26, 1
      %p112 = por %p110, %p111
      %p114 = scmp.ne.s32.totalorder %s99, %s113
      %p115 = scmp.eq.s32.totalorder %s26, 0
      %p116 = por %p114, %p115
      %s118 = sadd.s32 %s117, 1
      %p121 = scmp.eq.s32.totalorder %s20, 1
      %p122 = scmp.ne.s32.totalorder %s117, %s119
      %p123 = scmp.eq.s32.totalorder %s20, 0
      %p124 = por %p122, %p123
      %p125 = scmp.ne.s32.totalorder %s117, %s119
      %p126 = scmp.eq.s32.totalorder %s25, 1
      %p127 = por %p125, %p126
      %p128 = scmp.ne.s32.totalorder %s119, %s120
      %p129 = scmp.eq.s32.totalorder %s25, 0
      %p130 = por %p128, %p129
      %p131 = scmp.ne.s32.totalorder %s119, %s120
      %p132 = scmp.eq.s32.totalorder %s26, 1
      %p133 = por %p131, %p132
      %p135 = scmp.ne.s32.totalorder %s120, %s134
      %p136 = scmp.eq.s32.totalorder %s26, 0
      %p137 = por %p135, %p136
      %s138 = ssub.s32 %s20, %s27
      %p139 = scmp.eq.s32.totalorder %s138, 0
      %s141 = sadd.s32 %s140, 1
      %s142 = scalar_select %p139, %s140, %s141
      %p145 = pneg %p139
      %p146 = scmp.eq.s32.totalorder %s20, 1
      %p147 = por %p145, %p146
      %p148 = scmp.ne.s32.totalorder %s140, %s143
      %p149 = scmp.eq.s32.totalorder %s20, 0
      %p150 = por %p148, %p149
      %p151 = scmp.ne.s32.totalorder %s140, %s143
      %p152 = scmp.eq.s32.totalorder %s25, 1
      %p153 = por %p151, %p152
      %p154 = scmp.ne.s32.totalorder %s143, %s144
      %p155 = scmp.eq.s32.totalorder %s25, 0
      %p156 = por %p154, %p155
      %p157 = scmp.ne.s32.totalorder %s143, %s144
      %p158 = scmp.eq.s32.totalorder %s26, 1
      %p159 = por %p157, %p158
      %p161 = scmp.ne.s32.totalorder %s144, %s160
      %p162 = scmp.eq.s32.totalorder %s26, 0
      %p163 = por %p161, %p162
      %s164 = ssub.s32 %s20, %s27
      %p165 = scmp.eq.s32.totalorder %s164, 0
      %s167 = sadd.s32 %s166, 1
      %s168 = scalar_select %p165, %s166, %s167
      %p171 = pneg %p165
      %p172 = scmp.eq.s32.totalorder %s20, 1
      %p173 = por %p171, %p172
      %p174 = scmp.ne.s32.totalorder %s166, %s169
      %p175 = scmp.eq.s32.totalorder %s20, 0
      %p176 = por %p174, %p175
      %p177 = scmp.ne.s32.totalorder %s166, %s169
      %p178 = scmp.eq.s32.totalorder %s25, 1
      %p179 = por %p177, %p178
      %p180 = scmp.ne.s32.totalorder %s169, %s170
      %p181 = scmp.eq.s32.totalorder %s25, 0
      %p182 = por %p180, %p181
      %p183 = scmp.ne.s32.totalorder %s169, %s170
      %p184 = scmp.eq.s32.totalorder %s26, 1
      %p185 = por %p183, %p184
      %p187 = scmp.ne.s32.totalorder %s170, %s186
      %p188 = scmp.eq.s32.totalorder %s26, 0
      %p189 = por %p187, %p188
      %s190 = ssub.s32 %s20, %s27
      %p191 = scmp.eq.s32.totalorder %s190, 0
      %s193 = sadd.s32 %s192, 1
      %s194 = scalar_select %p191, %s192, %s193
      %p197 = pneg %p191
      %p198 = scmp.eq.s32.totalorder %s20, 1
      %p199 = por %p197, %p198
      %p200 = scmp.ne.s32.totalorder %s192, %s195
      %p201 = scmp.eq.s32.totalorder %s20, 0
      %p202 = por %p200, %p201
      %p203 = scmp.ne.s32.totalorder %s192, %s195
      %p204 = scmp.eq.s32.totalorder %s25, 1
      %p205 = por %p203, %p204
      %p206 = scmp.ne.s32.totalorder %s195, %s196
      %p207 = scmp.eq.s32.totalorder %s25, 0
      %p208 = por %p206, %p207
      %p209 = scmp.ne.s32.totalorder %s195, %s196
      %p210 = scmp.eq.s32.totalorder %s26, 1
      %p211 = por %p209, %p210
      %p213 = scmp.ne.s32.totalorder %s196, %s212
      %p214 = scmp.eq.s32.totalorder %s26, 0
      %p215 = por %p213, %p214
      %p216 = scmp.le.s32.totalorder 1, %s20
      %p217 = scmp.lt.s32.totalorder %s20, 3
      %p218 = pnand %p216, %p217
      %p219 = pneg %p218
      // Predicated region
      $region9: #{_lambda_.1} parent=5 // pred_check
        _
      $region10: #{_lambda_.1} parent=5 // pred_check_branch
        %221 = sbr.rel (%p218) target = $region12
      $region11: #{_lambda_.1} parent=5 // pred_region
        %s222 = ssub.s32 %s20, 1
        // Predicated region
        $region13: #{_lambda_.1} parent=11 // pred_check
          %p223 = pneg %p67
        $region14: #{_lambda_.1} parent=11 // pred_check_branch
          %225 = sbr.rel (%p223) target = $region16
        $region15: #{_lambda_.1} parent=11 // pred_region
          _
        $region16: #{_lambda_.1} parent=11 // pred_fallthru
          _
        // Predicated region
        $region17: #{_lambda_.1} parent=11 // pred_check
          %p226 = pneg %p88
        $region18: #{_lambda_.1} parent=11 // pred_check_branch
          %228 = sbr.rel (%p226) target = $region20
        $region19: #{_lambda_.1} parent=11 // pred_region
          _
        $region20: #{_lambda_.1} parent=11 // pred_fallthru
          _
        // Predicated region
        $region21: #{_lambda_.1} parent=11 // pred_check
          %p229 = pneg %p109
        $region22: #{_lambda_.1} parent=11 // pred_check_branch
          %231 = sbr.rel (%p229) target = $region24
        $region23: #{_lambda_.1} parent=11 // pred_region
          _
        $region24: #{_lambda_.1} parent=11 // pred_fallthru
          _
        // Predicated region
        $region25: #{_lambda_.1} parent=11 // pred_check
          %p232 = pneg %p130
        $region26: #{_lambda_.1} parent=11 // pred_check_branch
          %234 = sbr.rel (%p232) target = $region28
        $region27: #{_lambda_.1} parent=11 // pred_region
          _
        $region28: #{_lambda_.1} parent=11 // pred_fallthru
          _
      $region12: #{_lambda_.1} parent=5 // pred_fallthru
        _
      %p235 = scmp.lt.s32.totalorder %s20, 2
      // Predicated region
      $region29: #{_lambda_.1} parent=5 // pred_check
        %p236 = pneg %p235
      $region30: #{_lambda_.1} parent=5 // pred_check_branch
        %238 = sbr.rel (%p236) target = $region32
      $region31: #{_lambda_.1} parent=5 // pred_region
        // Predicated region
        $region33: #{_lambda_.1} parent=31 // pred_check
          %p239 = pneg %p40
        $region34: #{_lambda_.1} parent=31 // pred_check_branch
          %241 = sbr.rel (%p239) target = $region36
        $region35: #{_lambda_.1} parent=31 // pred_region
          %p242 = scmp.lt.s32.totalorder %s20, 1
          %s243 = scalar_select %p242, %s20, 1
          %s244 = smul.addr %s243, 8
          %s245 = smul.addr %s244, 8
          %s246 = scalar_lea.vmem %s0, %s245
        $region36: #{_lambda_.1} parent=31 // pred_fallthru
          _
      $region32: #{_lambda_.1} parent=5 // pred_fallthru
        _
      %p247 = scmp.le.s32.totalorder 1, %s20
      %p248 = scmp.lt.s32.totalorder %s20, 3
      %p249 = pnand %p247, %p248
      %p250 = pneg %p249
      // Predicated region
      $region37: #{_lambda_.1} parent=5 // pred_check
        _
      $region38: #{_lambda_.1} parent=5 // pred_check_branch
        %252 = sbr.rel (%p249) target = $region40
      $region39: #{_lambda_.1} parent=5 // pred_region
        %s253 = ssub.s32 %s20, 1
        %p254 = scmp.lt.s32.totalorder %s25, 1
        %s255 = scalar_select %p254, %s25, 1
        %s256 = smul.addr %s255, 8
        %s257 = smul.addr %s256, 8
        %s258 = scalar_lea.vmem %s0, %s257
        %p259 = pneg %p46
        %p260 = pneg %p43
        %p261 = pneg %p67
        %p262 = pneg %p64
        %p263 = pneg %p88
        %p264 = pneg %p85
        %p265 = pneg %p109
        %p266 = pneg %p106
        %p267 = pneg %p130
        %p268 = pneg %p127
        %p269 = pneg %p156
        %p270 = pneg %p153
        %s271 = sand.u32 %s143, 1
        %s272 = scalar_lea.sflag [#allocation5], %s271
        %s273 = sand.u32 %s143, 1
        %s274 = smul.addr %s273, 64
        %s275 = scalar_lea.vmem [#allocation4], %s274
        %p276 = pneg %p182
        %p277 = pneg %p179
        %s278 = sand.u32 %s25, 1
        %s279 = scalar_lea.sflag [#allocation7], %s278
        %s280 = sand.u32 %s169, 1
        %s281 = smul.addr %s280, 64
        %s282 = scalar_lea.vmem [#allocation6], %s281
        %p283 = pneg %p208
        %p284 = pneg %p205
        %s285 = sand.u32 %s25, 1
        %s286 = scalar_lea.sflag [#allocation7], %s285
        %s287 = sand.u32 %s195, 1
        %s288 = smul.addr %s287, 64
        %s289 = scalar_lea.vmem [#allocation8], %s288
        %p290 = scmp.lt.s32.totalorder %s25, 1
        %s291 = scalar_select %p290, %s25, 1
        %s292 = smul.addr %s291, 8
        %s293 = smul.addr %s292, 8
        %s294 = scalar_lea.vmem %s0, %s293
        %v296 = vld [vmem:[%s294] sm:$0xff]
        %v297 = vld [vmem:[%s294 + $0x8] sm:$0xff]
        %v298 = vld [vmem:[%s294 + $0x10] sm:$0xff]
        %v299 = vld [vmem:[%s294 + $0x18] sm:$0xff]
        %v300 = vld [vmem:[%s294 + $0x20] sm:$0xff]
        %v301 = vld [vmem:[%s294 + $0x28] sm:$0xff]
        %v302 = vld [vmem:[%s294 + $0x30] sm:$0xff]
        %v303 = vld [vmem:[%s294 + $0x38] sm:$0xff]
        %v304 = vpack.c.bf16 %v298, %v296
        %v305 = vpack.c.bf16 %v299, %v297
        %v306 = vpack.c.bf16 %v302, %v300
        %v307 = vpack.c.bf16 %v303, %v301
        %v308 = vld [vmem:[%s1] sm:$0xf]
        %v309 = vld [vmem:[%s2] sm:$0xff]
        %311 = vset.pattern.permute.xlu0 0
        %312 = vperm.xlu0 %311, %v309
        %v313 = vpop.permute.xlu0 %312
        %vm315 = vcmask 261120
        %v317 = vsel %vm315, %v308, 0
        %319 = vmatprep.subr.bf16.mxu0 %v305
        %320 = vmatpush1.bf16.msra.mxu0 %v304
        %321 = vmatprep.subr.bf16.mxu0 %v307
        %322 = vmatpush1.bf16.msra.mxu0 %v306
        %323 = vmatprep.subr.bf16.mxu0 0
        %324 = vmatpush1.bf16.msra.mxu0 0
        %325 = vmatprep.subr.bf16.mxu0 0
        %326 = vmatpush1.bf16.msra.mxu0 0
        %327 = vmatprep.subr.bf16.mxu0 0
        %328 = vmatpush1.bf16.msra.mxu0 0
        %329 = vmatprep.subr.bf16.mxu0 0
        %330 = vmatpush1.bf16.msra.mxu0 0
        %331 = vmatprep.subr.bf16.mxu0 0
        %332 = vmatpush1.bf16.msra.mxu0 0
        %333 = vmatprep.subr.bf16.mxu0 0
        %334 = vmatpush1.bf16.msra.mxu0 0
        %335 = vmatprep.subr.bf16.mxu0 0
        %336 = vmatpush1.bf16.msra.mxu0 0
        %337 = vmatprep.subr.bf16.mxu0 0
        %338 = vmatpush1.bf16.msra.mxu0 0
        %339 = vmatprep.subr.bf16.mxu0 0
        %340 = vmatpush1.bf16.msra.mxu0 0
        %341 = vmatprep.subr.bf16.mxu0 0
        %342 = vmatpush1.bf16.msra.mxu0 0
        %343 = vmatprep.subr.bf16.mxu0 0
        %344 = vmatpush1.bf16.msra.mxu0 0
        %345 = vmatprep.subr.bf16.mxu0 0
        %346 = vmatpush1.bf16.msra.mxu0 0
        %347 = vmatprep.subr.bf16.mxu0 0
        %348 = vmatpush1.bf16.msra.mxu0 0
        %349 = vmatprep.subr.bf16.mxu0 0
        %350 = vmatpush1.bf16.msra.mxu0 0
        %351 = vmatprep.mubr.bf16.mxu0 0
        %352 = vmatmul.mubr.bf16.gmra.mrb[0].mxu0 %v317
        %v353 = vpop.f32.mrb[0].mxu0
        %v354 = vadd.f32 %v313, %v353
        %v355 = vpop.f32.mrb[0].mxu0
        %v356 = vadd.f32 %v313, %v355
        %v357 = vpop.f32.mrb[0].mxu0
        %v358 = vpop.f32.mrb[0].mxu0
        %359 = vdwg.mxu0
        %360 = vst [vmem:[#allocation2] sm:$0xff] %v354
        %361 = vst [vmem:[#allocation2 + $0x8] sm:$0xff] %v356
        %v362 = vld [vmem:[#allocation2] ss:$8 sm:$0x3]
        %s363 = scalar_lea.vmem [#allocation2], 1
        %v364 = vld [vmem:[%s363] ss:$8 sm:$0x3]
        %v365 = vxor.u32 %v362, 2147483648
        %v366 = vmul.f32 %v365, 1.442695
        %v367 = vpow.pop %v366
        %v368 = vadd.f32 %v367, 1.0
        %v369 = vrcp.pop %v368
        %v370 = vmul.f32 1.0, %v369
        %v371 = vmul.f32 %v364, %v370
        %s372 = scalar_lea.vmem [#allocation2], 2
        %v373 = vld [vmem:[%s372] ss:$8 sm:$0x3]
        %v374 = vxor.u32 %v371, 2147483648
        %v375 = vmul.f32 %v374, 1.442695
        %v376 = vpow.pop %v375
        %v377 = vadd.f32 %v376, 1.0
        %v378 = vrcp.pop %v377
        %v379 = vmul.f32 1.0, %v378
        %v380 = vmul.f32 %v373, %v379
        %v381 = vlaneseq
        %vm382 = vcmp.ge.s32.totalorder %v381, 0
        %vm383 = vcmp.lt.s32.totalorder %v381, 256
        %vm384 = vmand %vm382, %vm383
        %385 = vst.msk [vmem:[%s363] ss:$8 sm:$0x3] %vm384, %v371
        %386 = vst.msk [vmem:[%s363] ss:$8 sm:$0x0] %vm384, %v371
        %387 = vst.msk [vmem:[%s372] ss:$8 sm:$0x3] %vm384, %v380
        %388 = vst.msk [vmem:[%s372] ss:$8 sm:$0x0] %vm384, %v380
        %v389 = vld [vmem:[#allocation2] ss:$0 sm:$0xff]
        %vm390 = vcmask 122880
        %391 = vst.msk [vmem:[#allocation3] sm:$0x1] %vm390, %v389
        %v392 = vld [vmem:[#allocation2] ss:$0 sm:$0xff]
        %394 = vrot.lane.b32.xlu0 %v392, 112
        %v395 = vpop.permute.xlu0 %394
        %397 = vst.msk [vmem:[#allocation3 + $0x1] sm:$0x1] %vm390, %v395
        %v398 = vld [vmem:[#allocation2] ss:$0 sm:$0xff]
        %400 = vrot.lane.b32.xlu0 %v398, 96
        %v401 = vpop.permute.xlu0 %400
        %403 = vst.msk [vmem:[#allocation3 + $0x2] sm:$0x1] %vm390, %v401
        %v404 = vld [vmem:[#allocation2] ss:$0 sm:$0xff]
        %406 = vrot.lane.b32.xlu0 %v404, 80
        %v407 = vpop.permute.xlu0 %406
        %409 = vst.msk [vmem:[#allocation3 + $0x3] sm:$0x1] %vm390, %v407
        %v410 = vld [vmem:[#allocation2] ss:$0 sm:$0xff]
        %412 = vrot.lane.b32.xlu0 %v410, 64
        %v413 = vpop.permute.xlu0 %412
        %415 = vst.msk [vmem:[#allocation3 + $0x4] sm:$0x1] %vm390, %v413
        %v416 = vld [vmem:[#allocation2] ss:$0 sm:$0xff]
        %418 = vrot.lane.b32.xlu0 %v416, 48
        %v419 = vpop.permute.xlu0 %418
        %421 = vst.msk [vmem:[#allocation3 + $0x5] sm:$0x1] %vm390, %v419
        %v422 = vld [vmem:[#allocation2] ss:$0 sm:$0xff]
        %424 = vrot.lane.b32.xlu0 %v422, 32
        %v425 = vpop.permute.xlu0 %424
        %427 = vst.msk [vmem:[#allocation3 + $0x6] sm:$0x1] %vm390, %v425
        %v428 = vld [vmem:[#allocation2] ss:$0 sm:$0xff]
        %430 = vrot.lane.b32.xlu0 %v428, 16
        %v431 = vpop.permute.xlu0 %430
        %433 = vst.msk [vmem:[#allocation3 + $0x7] sm:$0x1] %vm390, %v431
        %v434 = vld [vmem:[#allocation2 + $0x8] ss:$0 sm:$0xff]
        %435 = vst.msk [vmem:[#allocation3 + $0x8] sm:$0x1] %vm390, %v434
        %v436 = vld [vmem:[#allocation2 + $0x8] ss:$0 sm:$0xff]
        %438 = vrot.lane.b32.xlu0 %v436, 112
        %v439 = vpop.permute.xlu0 %438
        %441 = vst.msk [vmem:[#allocation3 + $0x9] sm:$0x1] %vm390, %v439
        %v442 = vld [vmem:[#allocation2 + $0x8] ss:$0 sm:$0xff]
        %444 = vrot.lane.b32.xlu0 %v442, 96
        %v445 = vpop.permute.xlu0 %444
        %447 = vst.msk [vmem:[#allocation3 + $0xa] sm:$0x1] %vm390, %v445
        %v448 = vld [vmem:[#allocation2 + $0x8] ss:$0 sm:$0xff]
        %450 = vrot.lane.b32.xlu0 %v448, 80
        %v451 = vpop.permute.xlu0 %450
        %453 = vst.msk [vmem:[#allocation3 + $0xb] sm:$0x1] %vm390, %v451
        %v454 = vld [vmem:[#allocation2 + $0x8] ss:$0 sm:$0xff]
        %456 = vrot.lane.b32.xlu0 %v454, 64
        %v457 = vpop.permute.xlu0 %456
        %459 = vst.msk [vmem:[#allocation3 + $0xc] sm:$0x1] %vm390, %v457
        %v460 = vld [vmem:[#allocation2 + $0x8] ss:$0 sm:$0xff]
        %462 = vrot.lane.b32.xlu0 %v460, 48
        %v463 = vpop.permute.xlu0 %462
        %465 = vst.msk [vmem:[#allocation3 + $0xd] sm:$0x1] %vm390, %v463
        %v466 = vld [vmem:[#allocation2 + $0x8] ss:$0 sm:$0xff]
        %468 = vrot.lane.b32.xlu0 %v466, 32
        %v469 = vpop.permute.xlu0 %468
        %471 = vst.msk [vmem:[#allocation3 + $0xe] sm:$0x1] %vm390, %v469
        %v472 = vld [vmem:[#allocation2 + $0x8] ss:$0 sm:$0xff]
        %474 = vrot.lane.b32.xlu0 %v472, 16
        %v475 = vpop.permute.xlu0 %474
        %477 = vst.msk [vmem:[#allocation3 + $0xf] sm:$0x1] %vm390, %v475
        %v478 = vld [vmem:[#allocation2 + $0x1] ss:$0 sm:$0xff]
        %479 = vst.msk [vmem:[#allocation3 + $0x10] sm:$0x1] %vm390, %v478
        %v480 = vld [vmem:[#allocation2 + $0x1] ss:$0 sm:$0xff]
        %482 = vrot.lane.b32.xlu0 %v480, 112
        %v483 = vpop.permute.xlu0 %482
        %485 = vst.msk [vmem:[#allocation3 + $0x11] sm:$0x1] %vm390, %v483
        %v486 = vld [vmem:[#allocation2 + $0x1] ss:$0 sm:$0xff]
        %488 = vrot.lane.b32.xlu0 %v486, 96
        %v489 = vpop.permute.xlu0 %488
        %491 = vst.msk [vmem:[#allocation3 + $0x12] sm:$0x1] %vm390, %v489
        %v492 = vld [vmem:[#allocation2 + $0x1] ss:$0 sm:$0xff]
        %494 = vrot.lane.b32.xlu0 %v492, 80
        %v495 = vpop.permute.xlu0 %494
        %497 = vst.msk [vmem:[#allocation3 + $0x13] sm:$0x1] %vm390, %v495
        %v498 = vld [vmem:[#allocation2 + $0x1] ss:$0 sm:$0xff]
        %500 = vrot.lane.b32.xlu0 %v498, 64
        %v501 = vpop.permute.xlu0 %500
        %503 = vst.msk [vmem:[#allocation3 + $0x14] sm:$0x1] %vm390, %v501
        %v504 = vld [vmem:[#allocation2 + $0x1] ss:$0 sm:$0xff]
        %506 = vrot.lane.b32.xlu0 %v504, 48
        %v507 = vpop.permute.xlu0 %506
        %509 = vst.msk [vmem:[#allocation3 + $0x15] sm:$0x1] %vm390, %v507
        %v510 = vld [vmem:[#allocation2 + $0x1] ss:$0 sm:$0xff]
        %512 = vrot.lane.b32.xlu0 %v510, 32
        %v513 = vpop.permute.xlu0 %512
        %515 = vst.msk [vmem:[#allocation3 + $0x16] sm:$0x1] %vm390, %v513
        %v516 = vld [vmem:[#allocation2 + $0x1] ss:$0 sm:$0xff]
        %518 = vrot.lane.b32.xlu0 %v516, 16
        %v519 = vpop.permute.xlu0 %518
        %521 = vst.msk [vmem:[#allocation3 + $0x17] sm:$0x1] %vm390, %v519
        %v522 = vld [vmem:[#allocation2 + $0x9] ss:$0 sm:$0xff]
        %523 = vst.msk [vmem:[#allocation3 + $0x18] sm:$0x1] %vm390, %v522
        %v524 = vld [vmem:[#allocation2 + $0x9] ss:$0 sm:$0xff]
        %526 = vrot.lane.b32.xlu0 %v524, 112
        %v527 = vpop.permute.xlu0 %526
        %529 = vst.msk [vmem:[#allocation3 + $0x19] sm:$0x1] %vm390, %v527
        %v530 = vld [vmem:[#allocation2 + $0x9] ss:$0 sm:$0xff]
        %532 = vrot.lane.b32.xlu0 %v530, 96
        %v533 = vpop.permute.xlu0 %532
        %535 = vst.msk [vmem:[#allocation3 + $0x1a] sm:$0x1] %vm390, %v533
        %v536 = vld [vmem:[#allocation2 + $0x9] ss:$0 sm:$0xff]
        %538 = vrot.lane.b32.xlu0 %v536, 80
        %v539 = vpop.permute.xlu0 %538
        %541 = vst.msk [vmem:[#allocation3 + $0x1b] sm:$0x1] %vm390, %v539
        %v542 = vld [vmem:[#allocation2 + $0x9] ss:$0 sm:$0xff]
        %544 = vrot.lane.b32.xlu0 %v542, 64
        %v545 = vpop.permute.xlu0 %544
        %547 = vst.msk [vmem:[#allocation3 + $0x1c] sm:$0x1] %vm390, %v545
        %v548 = vld [vmem:[#allocation2 + $0x9] ss:$0 sm:$0xff]
        %550 = vrot.lane.b32.xlu0 %v548, 48
        %v551 = vpop.permute.xlu0 %550
        %553 = vst.msk [vmem:[#allocation3 + $0x1d] sm:$0x1] %vm390, %v551
        %v554 = vld [vmem:[#allocation2 + $0x9] ss:$0 sm:$0xff]
        %556 = vrot.lane.b32.xlu0 %v554, 32
        %v557 = vpop.permute.xlu0 %556
        %559 = vst.msk [vmem:[#allocation3 + $0x1e] sm:$0x1] %vm390, %v557
        %v560 = vld [vmem:[#allocation2 + $0x9] ss:$0 sm:$0xff]
        %562 = vrot.lane.b32.xlu0 %v560, 16
        %v563 = vpop.permute.xlu0 %562
        %565 = vst.msk [vmem:[#allocation3 + $0x1f] sm:$0x1] %vm390, %v563
        %v566 = vld [vmem:[#allocation2 + $0x2] ss:$0 sm:$0xff]
        %567 = vst.msk [vmem:[#allocation3 + $0x20] sm:$0x1] %vm390, %v566
        %v568 = vld [vmem:[#allocation2 + $0x2] ss:$0 sm:$0xff]
        %570 = vrot.lane.b32.xlu0 %v568, 112
        %v571 = vpop.permute.xlu0 %570
        %573 = vst.msk [vmem:[#allocation3 + $0x21] sm:$0x1] %vm390, %v571
        %v574 = vld [vmem:[#allocation2 + $0x2] ss:$0 sm:$0xff]
        %576 = vrot.lane.b32.xlu0 %v574, 96
        %v577 = vpop.permute.xlu0 %576
        %579 = vst.msk [vmem:[#allocation3 + $0x22] sm:$0x1] %vm390, %v577
        %v580 = vld [vmem:[#allocation2 + $0x2] ss:$0 sm:$0xff]
        %582 = vrot.lane.b32.xlu0 %v580, 80
        %v583 = vpop.permute.xlu0 %582
        %585 = vst.msk [vmem:[#allocation3 + $0x23] sm:$0x1] %vm390, %v583
        %v586 = vld [vmem:[#allocation2 + $0x2] ss:$0 sm:$0xff]
        %588 = vrot.lane.b32.xlu0 %v586, 64
        %v589 = vpop.permute.xlu0 %588
        %591 = vst.msk [vmem:[#allocation3 + $0x24] sm:$0x1] %vm390, %v589
        %v592 = vld [vmem:[#allocation2 + $0x2] ss:$0 sm:$0xff]
        %594 = vrot.lane.b32.xlu0 %v592, 48
        %v595 = vpop.permute.xlu0 %594
        %597 = vst.msk [vmem:[#allocation3 + $0x25] sm:$0x1] %vm390, %v595
        %v598 = vld [vmem:[#allocation2 + $0x2] ss:$0 sm:$0xff]
        %600 = vrot.lane.b32.xlu0 %v598, 32
        %v601 = vpop.permute.xlu0 %600
        %603 = vst.msk [vmem:[#allocation3 + $0x26] sm:$0x1] %vm390, %v601
        %v604 = vld [vmem:[#allocation2 + $0x2] ss:$0 sm:$0xff]
        %606 = vrot.lane.b32.xlu0 %v604, 16
        %v607 = vpop.permute.xlu0 %606
        %609 = vst.msk [vmem:[#allocation3 + $0x27] sm:$0x1] %vm390, %v607
        %v610 = vld [vmem:[#allocation2 + $0xa] ss:$0 sm:$0xff]
        %611 = vst.msk [vmem:[#allocation3 + $0x28] sm:$0x1] %vm390, %v610
        %v612 = vld [vmem:[#allocation2 + $0xa] ss:$0 sm:$0xff]
        %614 = vrot.lane.b32.xlu0 %v612, 112
        %v615 = vpop.permute.xlu0 %614
        %617 = vst.msk [vmem:[#allocation3 + $0x29] sm:$0x1] %vm390, %v615
        %v618 = vld [vmem:[#allocation2 + $0xa] ss:$0 sm:$0xff]
        %620 = vrot.lane.b32.xlu0 %v618, 96
        %v621 = vpop.permute.xlu0 %620
        %623 = vst.msk [vmem:[#allocation3 + $0x2a] sm:$0x1] %vm390, %v621
        %v624 = vld [vmem:[#allocation2 + $0xa] ss:$0 sm:$0xff]
        %626 = vrot.lane.b32.xlu0 %v624, 80
        %v627 = vpop.permute.xlu0 %626
        %629 = vst.msk [vmem:[#allocation3 + $0x2b] sm:$0x1] %vm390, %v627
        %v630 = vld [vmem:[#allocation2 + $0xa] ss:$0 sm:$0xff]
        %632 = vrot.lane.b32.xlu0 %v630, 64
        %v633 = vpop.permute.xlu0 %632
        %635 = vst.msk [vmem:[#allocation3 + $0x2c] sm:$0x1] %vm390, %v633
        %v636 = vld [vmem:[#allocation2 + $0xa] ss:$0 sm:$0xff]
        %638 = vrot.lane.b32.xlu0 %v636, 48
        %v639 = vpop.permute.xlu0 %638
        %641 = vst.msk [vmem:[#allocation3 + $0x2d] sm:$0x1] %vm390, %v639
        %v642 = vld [vmem:[#allocation2 + $0xa] ss:$0 sm:$0xff]
        %644 = vrot.lane.b32.xlu0 %v642, 32
        %v645 = vpop.permute.xlu0 %644
        %647 = vst.msk [vmem:[#allocation3 + $0x2e] sm:$0x1] %vm390, %v645
        %v648 = vld [vmem:[#allocation2 + $0xa] ss:$0 sm:$0xff]
        %650 = vrot.lane.b32.xlu0 %v648, 16
        %v651 = vpop.permute.xlu0 %650
        %653 = vst.msk [vmem:[#allocation3 + $0x2f] sm:$0x1] %vm390, %v651
        %v654 = vld [vmem:[#allocation3] sm:$0xff]
        %v655 = vld [vmem:[#allocation3 + $0x8] sm:$0xff]
        %v656 = vld [vmem:[#allocation3 + $0x10] sm:$0xff]
        %v657 = vld [vmem:[#allocation3 + $0x18] sm:$0xff]
        %v658 = vld [vmem:[#allocation3 + $0x20] sm:$0xff]
        %v659 = vld [vmem:[#allocation3 + $0x28] sm:$0xff]
        %v660 = vld [vmem:[%s3] sm:$0xff]
        %v661 = vld [vmem:[%s3 + $0x8] sm:$0xff]
        %vm662 = vcmask 130048
        %v664 = vsel %vm662, %v654, 0
        %v667 = vsel %vm662, %v655, 0
        %v670 = vsel %vm662, %v656, 0
        %v673 = vsel %vm662, %v657, 0
        %v676 = vsel %vm662, %v658, 0
        %v679 = vsel %vm662, %v659, 0
        %681 = vmatprep.subr.mxu0 0.0
        %682 = vmatpush1.msra.mxu0 %v660
        %683 = vmatprep.subr.mxu0 0.0
        %684 = vmatpush1.msra.mxu0 %v661
        %685 = vmatprep.subr.mxu0 0.0
        %686 = vmatpush1.msra.mxu0 0.0
        %687 = vmatprep.subr.mxu0 0.0
        %688 = vmatpush1.msra.mxu0 0.0
        %689 = vmatprep.subr.mxu0 0.0
        %690 = vmatpush1.msra.mxu0 0.0
        %691 = vmatprep.subr.mxu0 0.0
        %692 = vmatpush1.msra.mxu0 0.0
        %693 = vmatprep.subr.mxu0 0.0
        %694 = vmatpush1.msra.mxu0 0.0
        %695 = vmatprep.subr.mxu0 0.0
        %696 = vmatpush1.msra.mxu0 0.0
        %697 = vmatprep.subr.mxu0 0.0
        %698 = vmatpush1.msra.mxu0 0.0
        %699 = vmatprep.subr.mxu0 0.0
        %700 = vmatpush1.msra.mxu0 0.0
        %701 = vmatprep.subr.mxu0 0.0
        %702 = vmatpush1.msra.mxu0 0.0
        %703 = vmatprep.subr.mxu0 0.0
        %704 = vmatpush1.msra.mxu0 0.0
        %705 = vmatprep.subr.mxu0 0.0
        %706 = vmatpush1.msra.mxu0 0.0
        %707 = vmatprep.subr.mxu0 0.0
        %708 = vmatpush1.msra.mxu0 0.0
        %709 = vmatprep.subr.mxu0 0.0
        %710 = vmatpush1.msra.mxu0 0.0
        %711 = vmatprep.subr.mxu0 0.0
        %712 = vmatpush1.msra.mxu0 0.0
        %713 = vmatprep.subr.mxu0 0.0
        %714 = vmatpush1.msra.mxu0 0.0
        %715 = vmatprep.subr.mxu0 0.0
        %716 = vmatpush1.msra.mxu0 0.0
        %717 = vmatprep.subr.mxu0 0.0
        %718 = vmatpush1.msra.mxu0 0.0
        %719 = vmatprep.subr.mxu0 0.0
        %720 = vmatpush1.msra.mxu0 0.0
        %721 = vmatprep.subr.mxu0 0.0
        %722 = vmatpush1.msra.mxu0 0.0
        %723 = vmatprep.subr.mxu0 0.0
        %724 = vmatpush1.msra.mxu0 0.0
        %725 = vmatprep.subr.mxu0 0.0
        %726 = vmatpush1.msra.mxu0 0.0
        %727 = vmatprep.subr.mxu0 0.0
        %728 = vmatpush1.msra.mxu0 0.0
        %729 = vmatprep.subr.mxu0 0.0
        %730 = vmatpush1.msra.mxu0 0.0
        %731 = vmatprep.subr.mxu0 0.0
        %732 = vmatpush1.msra.mxu0 0.0
        %733 = vmatprep.subr.mxu0 0.0
        %734 = vmatpush1.msra.mxu0 0.0
        %735 = vmatprep.subr.mxu0 0.0
        %736 = vmatpush1.msra.mxu0 0.0
        %737 = vmatprep.subr.mxu0 0.0
        %738 = vmatpush1.msra.mxu0 0.0
        %739 = vmatprep.subr.mxu0 0.0
        %740 = vmatpush1.msra.mxu0 0.0
        %741 = vmatprep.subr.mxu0 0.0
        %742 = vmatpush1.msra.mxu0 0.0
        %743 = vmatprep.subr.mxu0 0.0
        %744 = vmatpush1.msra.mxu0 0.0
        %745 = vmatprep.mubr.f32.mxu0 0.0
        %746 = vmatmul.mubr.f32.gmra.mrb[0].mxu0 %v664
        %v747 = vpop.f32.mrb[0].mxu0
        %v748 = vadd.f32 0.0, %v747
        %v749 = vpop.f32.mrb[0].mxu0
        %750 = vmatprep.mubr.f32.mxu0 0.0
        %751 = vmatmul.mubr.f32.gmra.mrb[0].mxu0 %v667
        %v752 = vpop.f32.mrb[0].mxu0
        %v753 = vadd.f32 0.0, %v752
        %v754 = vpop.f32.mrb[0].mxu0
        %755 = vmatprep.mubr.f32.mxu0 0.0
        %756 = vmatmul.mubr.f32.gmra.mrb[0].mxu0 %v670
        %v757 = vpop.f32.mrb[0].mxu0
        %v758 = vadd.f32 0.0, %v757
        %v759 = vpop.f32.mrb[0].mxu0
        %760 = vmatprep.mubr.f32.mxu0 0.0
        %761 = vmatmul.mubr.f32.gmra.mrb[0].mxu0 %v673
        %v762 = vpop.f32.mrb[0].mxu0
        %v763 = vadd.f32 0.0, %v762
        %v764 = vpop.f32.mrb[0].mxu0
        %765 = vmatprep.mubr.f32.mxu0 0.0
        %766 = vmatmul.mubr.f32.gmra.mrb[0].mxu0 %v676
        %v767 = vpop.f32.mrb[0].mxu0
        %v768 = vadd.f32 0.0, %v767
        %v769 = vpop.f32.mrb[0].mxu0
        %770 = vmatprep.mubr.f32.mxu0 0.0
        %771 = vmatmul.mubr.f32.gmra.mrb[0].mxu0 %v679
        %v772 = vpop.f32.mrb[0].mxu0
        %v773 = vadd.f32 0.0, %v772
        %v774 = vpop.f32.mrb[0].mxu0
        %775 = vdwg.mxu0
        %v776 = vld [vmem:[%s4] sm:$0xff]
        %v777 = vld [vmem:[%s4 + $0x8] sm:$0xff]
        %v778 = vld [vmem:[%s4 + $0x10] sm:$0xff]
        %v779 = vld [vmem:[%s4 + $0x18] sm:$0xff]
        %v780 = vld [vmem:[%s4 + $0x20] sm:$0xff]
        %v781 = vld [vmem:[%s4 + $0x28] sm:$0xff]
        %v782 = vld [vmem:[%s4 + $0x30] sm:$0xff]
        %v783 = vld [vmem:[%s4 + $0x38] sm:$0xff]
        %v784 = vld [vmem:[%s4 + $0x40] sm:$0xff]
        %v785 = vld [vmem:[%s4 + $0x48] sm:$0xff]
        %v786 = vld [vmem:[%s4 + $0x50] sm:$0xff]
        %v787 = vld [vmem:[%s4 + $0x58] sm:$0xff]
        %v788 = vld [vmem:[%s4 + $0x60] sm:$0xff]
        %v789 = vld [vmem:[%s4 + $0x68] sm:$0xff]
        %v790 = vld [vmem:[%s4 + $0x70] sm:$0xff]
        %v791 = vld [vmem:[%s4 + $0x78] sm:$0xff]
        %v792 = vld [vmem:[%s4 + $0x80] sm:$0xff]
        %v793 = vld [vmem:[%s4 + $0x88] sm:$0xff]
        %v794 = vld [vmem:[%s4 + $0x90] sm:$0xff]
        %v795 = vld [vmem:[%s4 + $0x98] sm:$0xff]
        %v796 = vld [vmem:[%s4 + $0xa0] sm:$0xff]
        %v797 = vld [vmem:[%s4 + $0xa8] sm:$0xff]
        %v798 = vld [vmem:[%s4 + $0xb0] sm:$0xff]
        %v799 = vld [vmem:[%s4 + $0xb8] sm:$0xff]
        %vm800 = vcmask 392192
        %v802 = vsel %vm800, %v776, 0
        %v805 = vsel %vm800, %v777, 0
        %v808 = vsel %vm800, %v778, 0
        %v811 = vsel %vm800, %v779, 0
        %v814 = vsel %vm800, %v780, 0
        %v817 = vsel %vm800, %v781, 0
        %v820 = vsel %vm800, %v782, 0
        %v823 = vsel %vm800, %v783, 0
        %v826 = vsel %vm800, %v784, 0
        %v829 = vsel %vm800, %v785, 0
        %v832 = vsel %vm800, %v786, 0
        %v835 = vsel %vm800, %v787, 0
        %v838 = vsel %vm800, %v788, 0
        %v841 = vsel %vm800, %v789, 0
        %v844 = vsel %vm800, %v790, 0
        %v847 = vsel %vm800, %v791, 0
        %v850 = vsel %vm800, %v792, 0
        %v853 = vsel %vm800, %v793, 0
        %v856 = vsel %vm800, %v794, 0
        %v859 = vsel %vm800, %v795, 0
        %v862 = vsel %vm800, %v796, 0
        %v865 = vsel %vm800, %v797, 0
        %v868 = vsel %vm800, %v798, 0
        %v871 = vsel %vm800, %v799, 0
        %873 = vmatprep.subr.mxu0 0.0
        %874 = vmatpush1.msra.mxu0 %v748
        %875 = vmatprep.subr.mxu0 0.0
        %876 = vmatpush1.msra.mxu0 %v753
        %877 = vmatprep.subr.mxu0 0.0
        %878 = vmatpush1.msra.mxu0 %v758
        %879 = vmatprep.subr.mxu0 0.0
        %880 = vmatpush1.msra.mxu0 %v763
        %881 = vmatprep.subr.mxu0 0.0
        %882 = vmatpush1.msra.mxu0 %v768
        %883 = vmatprep.subr.mxu0 0.0
        %884 = vmatpush1.msra.mxu0 %v773
        %885 = vmatprep.subr.mxu0 0.0
        %886 = vmatpush1.msra.mxu0 0.0
        %887 = vmatprep.subr.mxu0 0.0
        %888 = vmatpush1.msra.mxu0 0.0
        %889 = vmatprep.subr.mxu0 0.0
        %890 = vmatpush1.msra.mxu0 0.0
        %891 = vmatprep.subr.mxu0 0.0
        %892 = vmatpush1.msra.mxu0 0.0
        %893 = vmatprep.subr.mxu0 0.0
        %894 = vmatpush1.msra.mxu0 0.0
        %895 = vmatprep.subr.mxu0 0.0
        %896 = vmatpush1.msra.mxu0 0.0
        %897 = vmatprep.subr.mxu0 0.0
        %898 = vmatpush1.msra.mxu0 0.0
        %899 = vmatprep.subr.mxu0 0.0
        %900 = vmatpush1.msra.mxu0 0.0
        %901 = vmatprep.subr.mxu0 0.0
        %902 = vmatpush1.msra.mxu0 0.0
        %903 = vmatprep.subr.mxu0 0.0
        %904 = vmatpush1.msra.mxu0 0.0
        %905 = vmatprep.subr.mxu0 0.0
        %906 = vmatpush1.msra.mxu0 0.0
        %907 = vmatprep.subr.mxu0 0.0
        %908 = vmatpush1.msra.mxu0 0.0
        %909 = vmatprep.subr.mxu0 0.0
        %910 = vmatpush1.msra.mxu0 0.0
        %911 = vmatprep.subr.mxu0 0.0
        %912 = vmatpush1.msra.mxu0 0.0
        %913 = vmatprep.subr.mxu0 0.0
        %914 = vmatpush1.msra.mxu0 0.0
        %915 = vmatprep.subr.mxu0 0.0
        %916 = vmatpush1.msra.mxu0 0.0
        %917 = vmatprep.subr.mxu0 0.0
        %918 = vmatpush1.msra.mxu0 0.0
        %919 = vmatprep.subr.mxu0 0.0
        %920 = vmatpush1.msra.mxu0 0.0
        %921 = vmatprep.subr.mxu0 0.0
        %922 = vmatpush1.msra.mxu0 0.0
        %923 = vmatprep.subr.mxu0 0.0
        %924 = vmatpush1.msra.mxu0 0.0
        %925 = vmatprep.subr.mxu0 0.0
        %926 = vmatpush1.msra.mxu0 0.0
        %927 = vmatprep.subr.mxu0 0.0
        %928 = vmatpush1.msra.mxu0 0.0
        %929 = vmatprep.subr.mxu0 0.0
        %930 = vmatpush1.msra.mxu0 0.0
        %931 = vmatprep.subr.mxu0 0.0
        %932 = vmatpush1.msra.mxu0 0.0
        %933 = vmatprep.subr.mxu0 0.0
        %934 = vmatpush1.msra.mxu0 0.0
        %935 = vmatprep.subr.mxu0 0.0
        %936 = vmatpush1.msra.mxu0 0.0
        %937 = vmatprep.mubr.f32.mxu0 0.0
        %938 = vmatmul.mubr.f32.gmra.mrb[0].mxu0 %v802
        %v939 = vpop.f32.mrb[0].mxu0
        %v940 = vadd.f32 0.0, %v939
        %v941 = vpop.f32.mrb[0].mxu0
        %942 = vmatprep.mubr.f32.mxu0 0.0
        %943 = vmatmul.mubr.f32.gmra.mrb[0].mxu0 %v805
        %v944 = vpop.f32.mrb[0].mxu0
        %v945 = vadd.f32 0.0, %v944
        %v946 = vpop.f32.mrb[0].mxu0
        %947 = vmatprep.mubr.f32.mxu0 0.0
        %948 = vmatmul.mubr.f32.gmra.mrb[0].mxu0 %v808
        %v949 = vpop.f32.mrb[0].mxu0
        %v950 = vadd.f32 0.0, %v949
        %v951 = vpop.f32.mrb[0].mxu0
        %952 = vmatprep.mubr.f32.mxu0 0.0
        %953 = vmatmul.mubr.f32.gmra.mrb[0].mxu0 %v811
        %v954 = vpop.f32.mrb[0].mxu0
        %v955 = vadd.f32 0.0, %v954
        %v956 = vpop.f32.mrb[0].mxu0
        %957 = vmatprep.mubr.f32.mxu0 0.0
        %958 = vmatmul.mubr.f32.gmra.mrb[0].mxu0 %v814
        %v959 = vpop.f32.mrb[0].mxu0
        %v960 = vadd.f32 0.0, %v959
        %v961 = vpop.f32.mrb[0].mxu0
        %962 = vmatprep.mubr.f32.mxu0 0.0
        %963 = vmatmul.mubr.f32.gmra.mrb[0].mxu0 %v817
        %v964 = vpop.f32.mrb[0].mxu0
        %v965 = vadd.f32 0.0, %v964
        %v966 = vpop.f32.mrb[0].mxu0
        %967 = vmatprep.mubr.f32.mxu0 0.0
        %968 = vmatmul.mubr.f32.gmra.mrb[0].mxu0 %v820
        %v969 = vpop.f32.mrb[0].mxu0
        %v970 = vadd.f32 0.0, %v969
        %v971 = vpop.f32.mrb[0].mxu0
        %972 = vmatprep.mubr.f32.mxu0 0.0
        %973 = vmatmul.mubr.f32.gmra.mrb[0].mxu0 %v823
        %v974 = vpop.f32.mrb[0].mxu0
        %v975 = vadd.f32 0.0, %v974
        %v976 = vpop.f32.mrb[0].mxu0
        %977 = vmatprep.mubr.f32.mxu0 0.0
        %978 = vmatmul.mubr.f32.gmra.mrb[0].mxu0 %v826
        %v979 = vpop.f32.mrb[0].mxu0
        %v980 = vadd.f32 0.0, %v979
        %v981 = vpop.f32.mrb[0].mxu0
        %982 = vmatprep.mubr.f32.mxu0 0.0
        %983 = vmatmul.mubr.f32.gmra.mrb[0].mxu0 %v829
        %v984 = vpop.f32.mrb[0].mxu0
        %v985 = vadd.f32 0.0, %v984
        %v986 = vpop.f32.mrb[0].mxu0
        %987 = vmatprep.mubr.f32.mxu0 0.0
        %988 = vmatmul.mubr.f32.gmra.mrb[0].mxu0 %v832
        %v989 = vpop.f32.mrb[0].mxu0
        %v990 = vadd.f32 0.0, %v989
        %v991 = vpop.f32.mrb[0].mxu0
        %992 = vmatprep.mubr.f32.mxu0 0.0
        %993 = vmatmul.mubr.f32.gmra.mrb[0].mxu0 %v835
        %v994 = vpop.f32.mrb[0].mxu0
        %v995 = vadd.f32 0.0, %v994
        %v996 = vpop.f32.mrb[0].mxu0
        %997 = vmatprep.mubr.f32.mxu0 0.0
        %998 = vmatmul.mubr.f32.gmra.mrb[0].mxu0 %v838
        %v999 = vpop.f32.mrb[0].mxu0
        %v1000 = vadd.f32 0.0, %v999
        %v1001 = vpop.f32.mrb[0].mxu0
        %1002 = vmatprep.mubr.f32.mxu0 0.0
        %1003 = vmatmul.mubr.f32.gmra.mrb[0].mxu0 %v841
        %v1004 = vpop.f32.mrb[0].mxu0
        %v1005 = vadd.f32 0.0, %v1004
        %v1006 = vpop.f32.mrb[0].mxu0
        %1007 = vmatprep.mubr.f32.mxu0 0.0
        %1008 = vmatmul.mubr.f32.gmra.mrb[0].mxu0 %v844
        %v1009 = vpop.f32.mrb[0].mxu0
        %v1010 = vadd.f32 0.0, %v1009
        %v1011 = vpop.f32.mrb[0].mxu0
        %1012 = vmatprep.mubr.f32.mxu0 0.0
        %1013 = vmatmul.mubr.f32.gmra.mrb[0].mxu0 %v847
        %v1014 = vpop.f32.mrb[0].mxu0
        %v1015 = vadd.f32 0.0, %v1014
        %v1016 = vpop.f32.mrb[0].mxu0
        %1017 = vmatprep.mubr.f32.mxu0 0.0
        %1018 = vmatmul.mubr.f32.gmra.mrb[0].mxu0 %v850
        %v1019 = vpop.f32.mrb[0].mxu0
        %v1020 = vadd.f32 0.0, %v1019
        %v1021 = vpop.f32.mrb[0].mxu0
        %1022 = vmatprep.mubr.f32.mxu0 0.0
        %1023 = vmatmul.mubr.f32.gmra.mrb[0].mxu0 %v853
        %v1024 = vpop.f32.mrb[0].mxu0
        %v1025 = vadd.f32 0.0, %v1024
        %v1026 = vpop.f32.mrb[0].mxu0
        %1027 = vmatprep.mubr.f32.mxu0 0.0
        %1028 = vmatmul.mubr.f32.gmra.mrb[0].mxu0 %v856
        %v1029 = vpop.f32.mrb[0].mxu0
        %v1030 = vadd.f32 0.0, %v1029
        %v1031 = vpop.f32.mrb[0].mxu0
        %1032 = vmatprep.mubr.f32.mxu0 0.0
        %1033 = vmatmul.mubr.f32.gmra.mrb[0].mxu0 %v859
        %v1034 = vpop.f32.mrb[0].mxu0
        %v1035 = vadd.f32 0.0, %v1034
        %v1036 = vpop.f32.mrb[0].mxu0
        %1037 = vmatprep.mubr.f32.mxu0 0.0
        %1038 = vmatmul.mubr.f32.gmra.mrb[0].mxu0 %v862
        %v1039 = vpop.f32.mrb[0].mxu0
        %v1040 = vadd.f32 0.0, %v1039
        %v1041 = vpop.f32.mrb[0].mxu0
        %1042 = vmatprep.mubr.f32.mxu0 0.0
        %1043 = vmatmul.mubr.f32.gmra.mrb[0].mxu0 %v865
        %v1044 = vpop.f32.mrb[0].mxu0
        %v1045 = vadd.f32 0.0, %v1044
        %v1046 = vpop.f32.mrb[0].mxu0
        %1047 = vmatprep.mubr.f32.mxu0 0.0
        %1048 = vmatmul.mubr.f32.gmra.mrb[0].mxu0 %v868
        %v1049 = vpop.f32.mrb[0].mxu0
        %v1050 = vadd.f32 0.0, %v1049
        %v1051 = vpop.f32.mrb[0].mxu0
        %1052 = vmatprep.mubr.f32.mxu0 0.0
        %1053 = vmatmul.mubr.f32.gmra.mrb[0].mxu0 %v871
        %v1054 = vpop.f32.mrb[0].mxu0
        %v1055 = vadd.f32 0.0, %v1054
        %v1056 = vpop.f32.mrb[0].mxu0
        %1057 = vdwg.mxu0
        %v1058 = vxor.u32 %v1020, 2147483648
        %v1059 = vxor.u32 %v1025, 2147483648
        %v1060 = vxor.u32 %v1030, 2147483648
        %v1061 = vxor.u32 %v1035, 2147483648
        %v1062 = vxor.u32 %v1040, 2147483648
        %v1063 = vxor.u32 %v1045, 2147483648
        %v1064 = vxor.u32 %v1050, 2147483648
        %v1065 = vxor.u32 %v1055, 2147483648
        %v1066 = vmul.f32 %v1058, 1.442695
        %v1067 = vpow.pop %v1066
        %v1068 = vmul.f32 %v1059, 1.442695
        %v1069 = vpow.pop %v1068
        %v1070 = vmul.f32 %v1060, 1.442695
        %v1071 = vpow.pop %v1070
        %v1072 = vmul.f32 %v1061, 1.442695
        %v1073 = vpow.pop %v1072
        %v1074 = vmul.f32 %v1062, 1.442695
        %v1075 = vpow.pop %v1074
        %v1076 = vmul.f32 %v1063, 1.442695
        %v1077 = vpow.pop %v1076
        %v1078 = vmul.f32 %v1064, 1.442695
        %v1079 = vpow.pop %v1078
        %v1080 = vmul.f32 %v1065, 1.442695
        %v1081 = vpow.pop %v1080
        %v1082 = vadd.f32 %v1067, 1.0
        %v1083 = vadd.f32 %v1069, 1.0
        %v1084 = vadd.f32 %v1071, 1.0
        %v1085 = vadd.f32 %v1073, 1.0
        %v1086 = vadd.f32 %v1075, 1.0
        %v1087 = vadd.f32 %v1077, 1.0
        %v1088 = vadd.f32 %v1079, 1.0
        %v1089 = vadd.f32 %v1081, 1.0
        %v1090 = vrcp.pop %v1082
        %v1091 = vmul.f32 1.0, %v1090
        %v1092 = vrcp.pop %v1083
        %v1093 = vmul.f32 1.0, %v1092
        %v1094 = vrcp.pop %v1084
        %v1095 = vmul.f32 1.0, %v1094
        %v1096 = vrcp.pop %v1085
        %v1097 = vmul.f32 1.0, %v1096
        %v1098 = vrcp.pop %v1086
        %v1099 = vmul.f32 1.0, %v1098
        %v1100 = vrcp.pop %v1087
        %v1101 = vmul.f32 1.0, %v1100
        %v1102 = vrcp.pop %v1088
        %v1103 = vmul.f32 1.0, %v1102
        %v1104 = vrcp.pop %v1089
        %v1105 = vmul.f32 1.0, %v1104
        %v1106 = vadd.f32 %v980, %v1091
        %v1107 = vadd.f32 %v985, %v1093
        %v1108 = vadd.f32 %v990, %v1095
        %v1109 = vadd.f32 %v995, %v1097
        %v1110 = vadd.f32 %v1000, %v1099
        %v1111 = vadd.f32 %v1005, %v1101
        %v1112 = vadd.f32 %v1010, %v1103
        %v1113 = vadd.f32 %v1015, %v1105
        %v1114 = vxor.u32 %v1106, 2147483648
        %v1115 = vxor.u32 %v1107, 2147483648
        %v1116 = vxor.u32 %v1108, 2147483648
        %v1117 = vxor.u32 %v1109, 2147483648
        %v1118 = vxor.u32 %v1110, 2147483648
        %v1119 = vxor.u32 %v1111, 2147483648
        %v1120 = vxor.u32 %v1112, 2147483648
        %v1121 = vxor.u32 %v1113, 2147483648
        %v1122 = vmul.f32 %v1114, 1.442695
        %v1123 = vpow.pop %v1122
        %v1124 = vmul.f32 %v1115, 1.442695
        %v1125 = vpow.pop %v1124
        %v1126 = vmul.f32 %v1116, 1.442695
        %v1127 = vpow.pop %v1126
        %v1128 = vmul.f32 %v1117, 1.442695
        %v1129 = vpow.pop %v1128
        %v1130 = vmul.f32 %v1118, 1.442695
        %v1131 = vpow.pop %v1130
        %v1132 = vmul.f32 %v1119, 1.442695
        %v1133 = vpow.pop %v1132
        %v1134 = vmul.f32 %v1120, 1.442695
        %v1135 = vpow.pop %v1134
        %v1136 = vmul.f32 %v1121, 1.442695
        %v1137 = vpow.pop %v1136
        %v1138 = vadd.f32 %v1123, 1.0
        %v1139 = vadd.f32 %v1125, 1.0
        %v1140 = vadd.f32 %v1127, 1.0
        %v1141 = vadd.f32 %v1129, 1.0
        %v1142 = vadd.f32 %v1131, 1.0
        %v1143 = vadd.f32 %v1133, 1.0
        %v1144 = vadd.f32 %v1135, 1.0
        %v1145 = vadd.f32 %v1137, 1.0
        %v1146 = vrcp.pop %v1138
        %v1147 = vmul.f32 1.0, %v1146
        %v1148 = vrcp.pop %v1139
        %v1149 = vmul.f32 1.0, %v1148
        %v1150 = vrcp.pop %v1140
        %v1151 = vmul.f32 1.0, %v1150
        %v1152 = vrcp.pop %v1141
        %v1153 = vmul.f32 1.0, %v1152
        %v1154 = vrcp.pop %v1142
        %v1155 = vmul.f32 1.0, %v1154
        %v1156 = vrcp.pop %v1143
        %v1157 = vmul.f32 1.0, %v1156
        %v1158 = vrcp.pop %v1144
        %v1159 = vmul.f32 1.0, %v1158
        %v1160 = vrcp.pop %v1145
        %v1161 = vmul.f32 1.0, %v1160
        %v1162 = vadd.f32 %v940, %v1147
        %v1163 = vadd.f32 %v945, %v1149
        %v1164 = vadd.f32 %v950, %v1151
        %v1165 = vadd.f32 %v955, %v1153
        %v1166 = vadd.f32 %v960, %v1155
        %v1167 = vadd.f32 %v965, %v1157
        %v1168 = vadd.f32 %v970, %v1159
        %v1169 = vadd.f32 %v975, %v1161
        %vm1170 = vcmask 523264
        %1171 = vst.msk [vmem:[%s275] sm:$0xff] %vm1170, %v1162
        %1172 = vst.msk [vmem:[%s275 + $0x8] sm:$0xff] %vm1170, %v1163
        %1173 = vst.msk [vmem:[%s275 + $0x10] sm:$0xff] %vm1170, %v1164
        %1174 = vst.msk [vmem:[%s275 + $0x18] sm:$0xff] %vm1170, %v1165
        %1175 = vst.msk [vmem:[%s275 + $0x20] sm:$0xff] %vm1170, %v1166
        %1176 = vst.msk [vmem:[%s275 + $0x28] sm:$0xff] %vm1170, %v1167
        %1177 = vst.msk [vmem:[%s275 + $0x30] sm:$0xff] %vm1170, %v1168
        %1178 = vst.msk [vmem:[%s275 + $0x38] sm:$0xff] %vm1170, %v1169
        %1179 = vst.msk [vmem:[%s282] sm:$0xff] %vm1170, %v1106
        %1180 = vst.msk [vmem:[%s282 + $0x8] sm:$0xff] %vm1170, %v1107
        %1181 = vst.msk [vmem:[%s282 + $0x10] sm:$0xff] %vm1170, %v1108
        %1182 = vst.msk [vmem:[%s282 + $0x18] sm:$0xff] %vm1170, %v1109
        %1183 = vst.msk [vmem:[%s282 + $0x20] sm:$0xff] %vm1170, %v1110
        %1184 = vst.msk [vmem:[%s282 + $0x28] sm:$0xff] %vm1170, %v1111
        %1185 = vst.msk [vmem:[%s282 + $0x30] sm:$0xff] %vm1170, %v1112
        %1186 = vst.msk [vmem:[%s282 + $0x38] sm:$0xff] %vm1170, %v1113
        %1187 = vst.msk [vmem:[%s289] sm:$0xff] %vm1170, %v1020
        %1188 = vst.msk [vmem:[%s289 + $0x8] sm:$0xff] %vm1170, %v1025
        %1189 = vst.msk [vmem:[%s289 + $0x10] sm:$0xff] %vm1170, %v1030
        %1190 = vst.msk [vmem:[%s289 + $0x18] sm:$0xff] %vm1170, %v1035
        %1191 = vst.msk [vmem:[%s289 + $0x20] sm:$0xff] %vm1170, %v1040
        %1192 = vst.msk [vmem:[%s289 + $0x28] sm:$0xff] %vm1170, %v1045
        %1193 = vst.msk [vmem:[%s289 + $0x30] sm:$0xff] %vm1170, %v1050
        %1194 = vst.msk [vmem:[%s289 + $0x38] sm:$0xff] %vm1170, %v1055
        %s1195 = sand.u32 %s143, 1
        %s1196 = scalar_lea.sflag [#allocation5], %s1195
        %s1197 = sand.u32 %s143, 1
        %s1198 = smul.addr %s1197, 64
        %s1199 = scalar_lea.vmem [#allocation4], %s1198
        %s1200 = sand.u32 %s25, 1
        %s1201 = scalar_lea.sflag [#allocation7], %s1200
        %s1202 = sand.u32 %s169, 1
        %s1203 = smul.addr %s1202, 64
        %s1204 = scalar_lea.vmem [#allocation6], %s1203
        %s1205 = sand.u32 %s25, 1
        %s1206 = scalar_lea.sflag [#allocation7], %s1205
        %s1207 = sand.u32 %s195, 1
        %s1208 = smul.addr %s1207, 64
        %s1209 = scalar_lea.vmem [#allocation8], %s1208
        // Predicated region
        $region41: #{_lambda_.1} parent=39 // pred_check
          %p1210 = pneg %p153
        $region42: #{_lambda_.1} parent=39 // pred_check_branch
          %1212 = sbr.rel (%p1210) target = $region44
        $region43: #{_lambda_.1} parent=39 // pred_region
          %s1214 = ssub.s32 1024, 1024
          %1215 = vsyncadd %s1196, %s1214
          %s1216 = smul.addr %s25, 8
          %s1217 = smul.addr %s1216, 128
          %s1218 = scalar_lea.hbm %s5, %s1217
          %s1219 = sshll.u32 %s1199, 4
          %s1220 = int_to_ptr.vmem [resolvable:$true] %s1219
          %1225 = dma.vmem_to_hbm [thread:$0]  %s1220, 1024, %s1218, %s1196, 128, 128, 8
        $region44: #{_lambda_.1} parent=39 // pred_fallthru
          _
        // Predicated region
        $region45: #{_lambda_.1} parent=39 // pred_check
          %p1226 = pneg %p179
        $region46: #{_lambda_.1} parent=39 // pred_check_branch
          %1228 = sbr.rel (%p1226) target = $region48
        $region47: #{_lambda_.1} parent=39 // pred_region
          %s1230 = ssub.s32 1024, 1024
          %1231 = vsyncadd %s1201, %s1230
          %s1232 = smul.addr %s25, 8
          %s1233 = smul.addr %s1232, 128
          %s1234 = scalar_lea.hbm %s6, %s1233
          %s1235 = sshll.u32 %s1204, 4
          %s1236 = int_to_ptr.vmem [resolvable:$true] %s1235
          %1241 = dma.vmem_to_hbm [thread:$0]  %s1236, 1024, %s1234, %s1201, 128, 128, 8
        $region48: #{_lambda_.1} parent=39 // pred_fallthru
          _
        // Predicated region
        $region49: #{_lambda_.1} parent=39 // pred_check
          %p1242 = pneg %p205
        $region50: #{_lambda_.1} parent=39 // pred_check_branch
          %1244 = sbr.rel (%p1242) target = $region52
        $region51: #{_lambda_.1} parent=39 // pred_region
          %s1246 = ssub.s32 1024, 1024
          %1247 = vsyncadd %s1206, %s1246
          %s1248 = smul.addr %s25, 8
          %s1249 = smul.addr %s1248, 128
          %s1250 = scalar_lea.hbm %s7, %s1249
          %s1251 = sshll.u32 %s1209, 4
          %s1252 = int_to_ptr.vmem [resolvable:$true] %s1251
          %1257 = dma.vmem_to_hbm [thread:$0]  %s1252, 1024, %s1250, %s1206, 128, 128, 8
        $region52: #{_lambda_.1} parent=39 // pred_fallthru
          _
      $region40: #{_lambda_.1} parent=5 // pred_fallthru
        _
      %p1258 = scmp.le.s32.totalorder 2, %s20
      // Predicated region
      $region53: #{_lambda_.1} parent=5 // pred_check
        %p1259 = pneg %p1258
      $region54: #{_lambda_.1} parent=5 // pred_check_branch
        %1261 = sbr.rel (%p1259) target = $region56
      $region55: #{_lambda_.1} parent=5 // pred_region
        %s1262 = ssub.s32 %s20, 2
        // Predicated region
        $region57: #{_lambda_.1} parent=55 // pred_check
          %p1263 = pneg %p159
        $region58: #{_lambda_.1} parent=55 // pred_check_branch
          %1265 = sbr.rel (%p1263) target = $region60
        $region59: #{_lambda_.1} parent=55 // pred_region
          %s1266 = sand.u32 %s144, 1
          %s1267 = scalar_lea.sflag [#allocation5], %s1266
          %s1268 = sand.u32 %s144, 1
          %s1269 = smul.addr %s1268, 64
          %s1270 = scalar_lea.vmem [#allocation4], %s1269
          %1271 = dma.done %s1267, 1024
        $region60: #{_lambda_.1} parent=55 // pred_fallthru
          _
        // Predicated region
        $region61: #{_lambda_.1} parent=55 // pred_check
          %p1272 = pneg %p185
        $region62: #{_lambda_.1} parent=55 // pred_check_branch
          %1274 = sbr.rel (%p1272) target = $region64
        $region63: #{_lambda_.1} parent=55 // pred_region
          %s1275 = sand.u32 %s26, 1
          %s1276 = scalar_lea.sflag [#allocation7], %s1275
          %s1277 = sand.u32 %s170, 1
          %s1278 = smul.addr %s1277, 64
          %s1279 = scalar_lea.vmem [#allocation6], %s1278
          %1280 = dma.done %s1276, 1024
        $region64: #{_lambda_.1} parent=55 // pred_fallthru
          _
        // Predicated region
        $region65: #{_lambda_.1} parent=55 // pred_check
          %p1281 = pneg %p211
        $region66: #{_lambda_.1} parent=55 // pred_check_branch
          %1283 = sbr.rel (%p1281) target = $region68
        $region67: #{_lambda_.1} parent=55 // pred_region
          %s1284 = sand.u32 %s26, 1
          %s1285 = scalar_lea.sflag [#allocation7], %s1284
          %s1286 = sand.u32 %s196, 1
          %s1287 = smul.addr %s1286, 64
          %s1288 = scalar_lea.vmem [#allocation8], %s1287
          %1289 = dma.done %s1285, 1024
        $region68: #{_lambda_.1} parent=55 // pred_fallthru
          _
      $region56: #{_lambda_.1} parent=5 // pred_fallthru
        _
    $region6: #{_lambda_.1} parent=1 // loop_footer
      %s24 = sadd.s32 1, %s20
    $region7: #{_lambda_.1} parent=1 // loop_footer_branch
      %19 = sbr.rel target = $region3
    $region8: #{_lambda_.1} parent=1 // loop_exit
      _
    %1290 = vsyncpa [#allocation5], 1
    %s1291 = scalar_lea.sflag [#allocation5], 1
    %1292 = vsyncpa %s1291, 1
    %1293 = vsyncpa [#allocation7], 1
    %s1294 = scalar_lea.sflag [#allocation7], 1
    %1295 = vsyncpa %s1294, 1

</llo_original>
